<compile_context>
chip_gen: v7x
topology: tpu7x:2x2x1
jax: 0.10.0
libtpu: 0.0.40
codegen_flags: <defaults>
</compile_context>

<pallas_src>
import functools

import jax
import jax.numpy as jnp
from jax.experimental import pallas as pl
from jax.experimental.pallas import tpu as pltpu

C = 256          # per-branch channel count (fixed by the module: 4 * 256 = 1024)
NUM_BRANCH = 4


# --------------------------------------------------------------------------- #
# Kernel
# --------------------------------------------------------------------------- #
def _mlfusion_kernel(x0_ref, x1_ref, x2_ref, x3_ref,   # [bt, HW, C] bf16 inputs
                     w_ref,                            # [4, C, C]  bf16 (BN scale folded in)
                     b_ref,                            # [4, C]     f32  (BN shift)
                     out_ref,                          # [bt, HW, C] f32 sum of gated branches
                     *, chunk):
    bt, hw, c = x0_ref.shape
    xs = (x0_ref, x1_ref, x2_ref, x3_ref)
    n_chunks = hw // chunk
    inv_hw = 1.0 / float(hw)

    # ---- Pass 1: per (branch, sample) pooled ReLU(conv(x)*scale + shift) -> gate.
    # Gates are tiny ((1, C) per sample) so they live as values, no scratch needed.
    gains = []                                          # gains[i][b] = sigmoid(gate)+1, (1, C) f32
    for i in range(NUM_BRANCH):
        w_i = w_ref[i]                                  # (C, C) bf16, loaded once per branch
        shift_i = b_ref[pl.ds(i, 1), :]                 # (1, C) f32
        per_sample = []
        for b in range(bt):
            def pooled_body(ci, pooled, _b=b, _w=w_i, _sh=shift_i, _x=xs[i]):
                start = pl.multiple_of(ci * chunk, chunk)
                rows = _x[_b, pl.ds(start, chunk), :]                 # (chunk, C) bf16
                attn = jnp.dot(rows, _w,
                               preferred_element_type=jnp.float32)    # MXU, f32 acc
                attn = jnp.maximum(attn + _sh, 0.0)                   # folded BN shift + ReLU
                return pooled + jnp.sum(attn, axis=0, keepdims=True)  # partial spatial sum
            pooled = jax.lax.fori_loop(0, n_chunks, pooled_body,
                                       jnp.zeros((1, c), jnp.float32))
            # AdaptiveAvgPool2d(1) -> sigmoid; fold the residual: gate*x + x = (gate+1)*x
            per_sample.append(jax.nn.sigmoid(pooled * inv_hw) + 1.0)
        gains.append(per_sample)

    # ---- Pass 2: out = sum_i x_i * (gate_i + 1); one lane-dense store per chunk.
    for b in range(bt):
        g = [gains[i][b] for i in range(NUM_BRANCH)]
        def store_body(ci, carry, _b=b, _g=g):
            start = pl.multiple_of(ci * chunk, chunk)
            acc = xs[0][_b, pl.ds(start, chunk), :].astype(jnp.float32) * _g[0]
            for i in range(1, NUM_BRANCH):
                acc = acc + xs[i][_b, pl.ds(start, chunk), :].astype(jnp.float32) * _g[i]
            out_ref[_b, pl.ds(start, chunk), :] = acc.astype(out_ref.dtype)
            return carry
        jax.lax.fori_loop(0, n_chunks, store_body, 0)


# --------------------------------------------------------------------------- #
# Tiling / VMEM planning
# --------------------------------------------------------------------------- #
def _choose_hw_chunk(hw, max_rows=512):
    """Largest divisor of hw that is <= max_rows and (preferably) a multiple of 8."""
    top = min(hw, max_rows)
    fallback = 1
    for d in range(top, 0, -1):
        if hw % d == 0:
            if d % 8 == 0:
                return d
            if fallback == 1:
                fallback = d
    # TODO(synk): prime-ish huge HW gives a tiny chunk here; correct but slow.
    return fallback


def _plan_tiles(n, hw):
    """Pick the batch tile (bt) and scoped-VMEM limit for this TPU generation."""
    try:
        capacity = pltpu.get_tpu_info().vmem_capacity_bytes
    except Exception:
        capacity = 64 << 20        # conservative: v7x per-TC VMEM

    # Working-set model per batch element in a block (pipeline double-buffered):
    #   4 bf16 input streams + 1 f32 output stream  ->  hw*C*(4*2 + 4) bytes, x2
    per_b = hw * C * (NUM_BRANCH * 2 + 4) * 2
    weights = 2 * (NUM_BRANCH * C * C * 2)              # bf16 attn weights, double-buffered
    reserve = 6 << 20                                   # chunk intermediates / spill headroom
    budget = int(capacity * 0.75)

    max_bt = max(1, (budget - weights - reserve) // per_b)
    bt = 1
    for d in range(1, n + 1):
        if n % d == 0 and d <= max_bt:
            bt = d
    # Prefer >= 4 (and an even number of) grid steps so prefetch of block i+1
    # hides under compute of block i and v7x's two TensorCores stay balanced,
    # as long as the MXU still sees a decent M = bt*HW.
    while (bt % 2 == 0 and (bt // 2) * hw >= 1024
           and ((n // bt) < 4 or (n // bt) % 2 == 1)):
        bt //= 2

    need = per_b * bt + weights + reserve
    vmem_limit = int(min(capacity * 0.95, need + (8 << 20)))
    vmem_limit = max(vmem_limit, 16 << 20)
    return bt, vmem_limit


# --------------------------------------------------------------------------- #
# Wrapper
# --------------------------------------------------------------------------- #
def nchw_to_kernel(x):
    """PyTorch NCHW [N,C,H,W] f32 -> kernel layout [N, H*W, C] bf16."""
    n, c, h, w = x.shape
    return jnp.transpose(x, (0, 2, 3, 1)).reshape(n, h * w, c).astype(jnp.bfloat16)


@jax.jit
def mlfusion(xs, attn_w, attn_scale, attn_shift):
    """xs: list of 4 arrays [N, HW, C] (channels-last, spatial flattened).

    attn_w[i]:  [Cin, Cout] 1x1-conv weight (transpose of PyTorch's [Cout,Cin,1,1]).
    attn_scale / attn_shift: [4, C] folded eval-mode BatchNorm scale / shift.
    """
    N, HW, _ = xs[0].shape
    bt, vmem_limit = _plan_tiles(N, HW)
    chunk = _choose_hw_chunk(HW)
    grid = (N // bt,)

    # Fold BN scale into the conv weights (per output channel); keep shift only.
    w_bf16 = jnp.stack(
        [attn_w[i] * attn_scale[i][None, :] for i in range(NUM_BRANCH)]
    ).astype(jnp.bfloat16)                                     # [4, C, C]
    shift = attn_shift.astype(jnp.float32)                     # [4, C]

    xs_bf = [x.astype(jnp.bfloat16) for x in xs]               # no-op if already bf16

    x_spec = pl.BlockSpec((bt, HW, C), lambda n: (n, 0, 0))
    out_spec = pl.BlockSpec((bt, HW, C), lambda n: (n, 0, 0))
    w_spec = pl.BlockSpec((NUM_BRANCH, C, C), lambda n: (0, 0, 0))
    b_spec = pl.BlockSpec((NUM_BRANCH, C), lambda n: (0, 0))

    cost = pl.CostEstimate(
        flops=2 * NUM_BRANCH * N * HW * C * C,
        transcendentals=NUM_BRANCH * N * C,
        bytes_accessed=(NUM_BRANCH * N * HW * C * 2       # bf16 inputs
                        + N * HW * C * 4                   # f32 output
                        + NUM_BRANCH * C * C * 2           # bf16 weights
                        + NUM_BRANCH * C * 4))             # f32 shifts

    out = pl.pallas_call(
        functools.partial(_mlfusion_kernel, chunk=chunk),
        out_shape=jax.ShapeDtypeStruct((N, HW, C), jnp.float32),
        grid_spec=pltpu.PrefetchScalarGridSpec(
            num_scalar_prefetch=0,
            grid=grid,
            in_specs=[x_spec, x_spec, x_spec, x_spec, w_spec, b_spec],
            out_specs=out_spec,
        ),
        compiler_params=pltpu.CompilerParams(
            dimension_semantics=("parallel",),
            vmem_limit_bytes=vmem_limit),
        cost_estimate=cost,
    )(xs_bf[0], xs_bf[1], xs_bf[2], xs_bf[3], w_bf16, shift)
    return out


# --------------------------------------------------------------------------- #
# Pure-JAX reference (f32) of the module's returned value
# --------------------------------------------------------------------------- #
def _reference(xs, attn_w, attn_scale, attn_shift):
    out = jnp.zeros_like(xs[0])
    for i in range(NUM_BRANCH):
        x = xs[i]
        attn = jnp.einsum('nmc,cd->nmd', x, attn_w[i])
        attn = attn * attn_scale[i][None, None, :] + attn_shift[i][None, None, :]
        attn = jnp.maximum(attn, 0.0)
        gate = jax.nn.sigmoid(jnp.mean(attn, axis=1, keepdims=True))
        out = out + gate * x + x
    return out


if __name__ == "__main__":
    key = jax.random.PRNGKey(0)
    N, H, W = 2, 8, 8
    HW = H * W

    keys = jax.random.split(key, 10)
    # PyTorch-layout inputs: 4 feature maps [N, 256, H, W]
    feats_nchw = [jax.random.normal(keys[i], (N, C, H, W), jnp.float32) * 0.5
                  for i in range(4)]

    # attn_conv weights: PyTorch Conv2d(256,256,1,bias=False).weight is [Cout,Cin,1,1];
    # kernel uses the transpose [Cin, Cout].
    attn_w = [jax.random.normal(keys[4 + i], (C, C), jnp.float32) * 0.05
              for i in range(4)]
    # Folded eval-mode BatchNorm: scale = gamma/sqrt(var+eps), shift = beta - mean*scale.
    attn_scale = 1.0 + 0.1 * jax.random.normal(keys[8], (NUM_BRANCH, C), jnp.float32)
    attn_shift = 0.1 * jax.random.normal(keys[9], (NUM_BRANCH, C), jnp.float32)

    xs = [nchw_to_kernel(f) for f in feats_nchw]        # [N, HW, C] bf16

    out = mlfusion(xs, attn_w, attn_scale, attn_shift)
    out = jax.block_until_ready(out)

    # f32 reference computed on the same bf16-rounded activations, so the only
    # deltas are the bf16 (scale-folded) weights and MXU accumulation order.
    xs_f32 = [x.astype(jnp.float32) for x in xs]
    ref = _reference(xs_f32, attn_w, attn_scale, attn_shift)

    assert out.shape == (N, HW, C)
    assert jnp.allclose(out, ref, atol=2e-2, rtol=2e-2), "mismatch vs pure-JAX reference"

    print("KERNEL_OK")
</pallas_src>

<mosaic_0001>
module attributes {stable_mosaic.version = 11 : i64} {
  func.func @_mlfusion_kernel(%arg0: i32, %arg1: memref<2x64x256xbf16, #tpu.memory_space<vmem>>, %arg2: memref<2x64x256xbf16, #tpu.memory_space<vmem>>, %arg3: memref<2x64x256xbf16, #tpu.memory_space<vmem>>, %arg4: memref<2x64x256xbf16, #tpu.memory_space<vmem>>, %arg5: memref<4x256x256xbf16, #tpu.memory_space<vmem>>, %arg6: memref<4x256xf32, #tpu.memory_space<vmem>>, %arg7: memref<2x64x256xf32, #tpu.memory_space<vmem>>) attributes {dimension_semantics = [#tpu.dimension_semantics<parallel>], iteration_bounds = array<i64: 1>, scalar_prefetch = 0 : i64, scratch_operands = 0 : i64, tpu.core_type = #tpu.core_type<tc>, window_params = [{transform_indices = @transform_0, window_bounds = array<i64: 2, 64, 256>}, {transform_indices = @transform_1, window_bounds = array<i64: 2, 64, 256>}, {transform_indices = @transform_2, window_bounds = array<i64: 2, 64, 256>}, {transform_indices = @transform_3, window_bounds = array<i64: 2, 64, 256>}, {pipeline_mode = #tpu.pipeline_mode<synchronous>, transform_indices = @transform_4, window_bounds = array<i64: 4, 256, 256>}, {pipeline_mode = #tpu.pipeline_mode<synchronous>, transform_indices = @transform_5, window_bounds = array<i64: 4, 256>}, {transform_indices = @transform_6, window_bounds = array<i64: 2, 64, 256>}]} {
    %c0 = arith.constant 0 : index
    %c0_0 = arith.constant 0 : index
    %c0_1 = arith.constant 0 : index
    %0 = vector.load %arg5[%c0, %c0_0, %c0_1] : memref<4x256x256xbf16, #tpu.memory_space<vmem>>, vector<1x256x256xbf16>
    %1 = vector.shape_cast %0 : vector<1x256x256xbf16> to vector<256x256xbf16>
    %c0_2 = arith.constant 0 : index
    %c0_3 = arith.constant 0 : index
    %2 = vector.load %arg6[%c0_2, %c0_3] : memref<4x256xf32, #tpu.memory_space<vmem>>, vector<1x256xf32>
    %cst = arith.constant 0.000000e+00 : f32
    %3 = vector.broadcast %cst : f32 to vector<1x256xf32>
    %c0_i32 = arith.constant 0 : i32
    %c64_i32 = arith.constant 64 : i32
    %4 = arith.muli %c0_i32, %c64_i32 : i32
    %5 = tpu.assume_multiple %4, 64 : i32
    %c0_4 = arith.constant 0 : index
    %6 = arith.index_cast %5 : i32 to index
    %c0_5 = arith.constant 0 : index
    %7 = vector.load %arg1[%c0_4, %6, %c0_5] : memref<2x64x256xbf16, #tpu.memory_space<vmem>>, vector<1x64x256xbf16>
    %8 = vector.shape_cast %7 : vector<1x64x256xbf16> to vector<64x256xbf16>
    %cst_6 = arith.constant dense<0.000000e+00> : vector<64x256xf32>
    %9 = tpu.matmul %8, %1, %cst_6 {dimension_numbers = #tpu.dot_dimension_numbers<[1], [0], [0], [1], [0, 0, 1, 1], [], []>} : vector<64x256xbf16>, vector<256x256xbf16>, vector<64x256xf32> -> vector<64x256xf32>
    %10 = vector.broadcast %2 : vector<1x256xf32> to vector<64x256xf32>
    %11 = arith.addf %9, %10 : vector<64x256xf32>
    %cst_7 = arith.constant 0.000000e+00 : f32
    %12 = vector.broadcast %cst_7 : f32 to vector<64x256xf32>
    %13 = arith.maximumf %11, %12 : vector<64x256xf32>
    %cst_8 = arith.constant dense<0.000000e+00> : vector<256xf32>
    %14 = vector.multi_reduction <add>, %13, %cst_8 [0] : vector<64x256xf32> to vector<256xf32>
    %15 = vector.shape_cast %14 : vector<256xf32> to vector<1x256xf32>
    %16 = arith.addf %3, %15 : vector<1x256xf32>
    %c1_i32 = arith.constant 1 : i32
    %cst_9 = arith.constant 1.562500e-02 : f32
    %17 = vector.broadcast %cst_9 : f32 to vector<1x256xf32>
    %18 = arith.mulf %16, %17 : vector<1x256xf32>
    %19 = arith.negf %18 : vector<1x256xf32>
    %20 = math.exp %19 : vector<1x256xf32>
    %cst_10 = arith.constant 1.000000e+00 : f32
    %21 = vector.broadcast %cst_10 : f32 to vector<1x256xf32>
    %22 = arith.addf %21, %20 : vector<1x256xf32>
    %23 = arith.divf %21, %22 : vector<1x256xf32>
    %cst_11 = arith.constant 1.000000e+00 : f32
    %24 = vector.broadcast %cst_11 : f32 to vector<1x256xf32>
    %25 = arith.addf %23, %24 : vector<1x256xf32>
    %cst_12 = arith.constant 0.000000e+00 : f32
    %26 = vector.broadcast %cst_12 : f32 to vector<1x256xf32>
    %c0_i32_13 = arith.constant 0 : i32
    %c64_i32_14 = arith.constant 64 : i32
    %27 = arith.muli %c0_i32_13, %c64_i32_14 : i32
    %28 = tpu.assume_multiple %27, 64 : i32
    %c1 = arith.constant 1 : index
    %29 = arith.index_cast %28 : i32 to index
    %c0_15 = arith.constant 0 : index
    %30 = vector.load %arg1[%c1, %29, %c0_15] : memref<2x64x256xbf16, #tpu.memory_space<vmem>>, vector<1x64x256xbf16>
    %31 = vector.shape_cast %30 : vector<1x64x256xbf16> to vector<64x256xbf16>
    %cst_16 = arith.constant dense<0.000000e+00> : vector<64x256xf32>
    %32 = tpu.matmul %31, %1, %cst_16 {dimension_numbers = #tpu.dot_dimension_numbers<[1], [0], [0], [1], [0, 0, 1, 1], [], []>} : vector<64x256xbf16>, vector<256x256xbf16>, vector<64x256xf32> -> vector<64x256xf32>
    %33 = vector.broadcast %2 : vector<1x256xf32> to vector<64x256xf32>
    %34 = arith.addf %32, %33 : vector<64x256xf32>
    %cst_17 = arith.constant 0.000000e+00 : f32
    %35 = vector.broadcast %cst_17 : f32 to vector<64x256xf32>
    %36 = arith.maximumf %34, %35 : vector<64x256xf32>
    %cst_18 = arith.constant dense<0.000000e+00> : vector<256xf32>
    %37 = vector.multi_reduction <add>, %36, %cst_18 [0] : vector<64x256xf32> to vector<256xf32>
    %38 = vector.shape_cast %37 : vector<256xf32> to vector<1x256xf32>
    %39 = arith.addf %26, %38 : vector<1x256xf32>
    %c1_i32_19 = arith.constant 1 : i32
    %cst_20 = arith.constant 1.562500e-02 : f32
    %40 = vector.broadcast %cst_20 : f32 to vector<1x256xf32>
    %41 = arith.mulf %39, %40 : vector<1x256xf32>
    %42 = arith.negf %41 : vector<1x256xf32>
    %43 = math.exp %42 : vector<1x256xf32>
    %cst_21 = arith.constant 1.000000e+00 : f32
    %44 = vector.broadcast %cst_21 : f32 to vector<1x256xf32>
    %45 = arith.addf %44, %43 : vector<1x256xf32>
    %46 = arith.divf %44, %45 : vector<1x256xf32>
    %cst_22 = arith.constant 1.000000e+00 : f32
    %47 = vector.broadcast %cst_22 : f32 to vector<1x256xf32>
    %48 = arith.addf %46, %47 : vector<1x256xf32>
    %c1_23 = arith.constant 1 : index
    %c0_24 = arith.constant 0 : index
    %c0_25 = arith.constant 0 : index
    %49 = vector.load %arg5[%c1_23, %c0_24, %c0_25] : memref<4x256x256xbf16, #tpu.memory_space<vmem>>, vector<1x256x256xbf16>
    %50 = vector.shape_cast %49 : vector<1x256x256xbf16> to vector<256x256xbf16>
    %c1_26 = arith.constant 1 : index
    %c0_27 = arith.constant 0 : index
    %51 = vector.load %arg6[%c1_26, %c0_27] : memref<4x256xf32, #tpu.memory_space<vmem>>, vector<1x256xf32>
    %cst_28 = arith.constant 0.000000e+00 : f32
    %52 = vector.broadcast %cst_28 : f32 to vector<1x256xf32>
    %c0_i32_29 = arith.constant 0 : i32
    %c64_i32_30 = arith.constant 64 : i32
    %53 = arith.muli %c0_i32_29, %c64_i32_30 : i32
    %54 = tpu.assume_multiple %53, 64 : i32
    %c0_31 = arith.constant 0 : index
    %55 = arith.index_cast %54 : i32 to index
    %c0_32 = arith.constant 0 : index
    %56 = vector.load %arg2[%c0_31, %55, %c0_32] : memref<2x64x256xbf16, #tpu.memory_space<vmem>>, vector<1x64x256xbf16>
    %57 = vector.shape_cast %56 : vector<1x64x256xbf16> to vector<64x256xbf16>
    %cst_33 = arith.constant dense<0.000000e+00> : vector<64x256xf32>
    %58 = tpu.matmul %57, %50, %cst_33 {dimension_numbers = #tpu.dot_dimension_numbers<[1], [0], [0], [1], [0, 0, 1, 1], [], []>} : vector<64x256xbf16>, vector<256x256xbf16>, vector<64x256xf32> -> vector<64x256xf32>
    %59 = vector.broadcast %51 : vector<1x256xf32> to vector<64x256xf32>
    %60 = arith.addf %58, %59 : vector<64x256xf32>
    %cst_34 = arith.constant 0.000000e+00 : f32
    %61 = vector.broadcast %cst_34 : f32 to vector<64x256xf32>
    %62 = arith.maximumf %60, %61 : vector<64x256xf32>
    %cst_35 = arith.constant dense<0.000000e+00> : vector<256xf32>
    %63 = vector.multi_reduction <add>, %62, %cst_35 [0] : vector<64x256xf32> to vector<256xf32>
    %64 = vector.shape_cast %63 : vector<256xf32> to vector<1x256xf32>
    %65 = arith.addf %52, %64 : vector<1x256xf32>
    %c1_i32_36 = arith.constant 1 : i32
    %cst_37 = arith.constant 1.562500e-02 : f32
    %66 = vector.broadcast %cst_37 : f32 to vector<1x256xf32>
    %67 = arith.mulf %65, %66 : vector<1x256xf32>
    %68 = arith.negf %67 : vector<1x256xf32>
    %69 = math.exp %68 : vector<1x256xf32>
    %cst_38 = arith.constant 1.000000e+00 : f32
    %70 = vector.broadcast %cst_38 : f32 to vector<1x256xf32>
    %71 = arith.addf %70, %69 : vector<1x256xf32>
    %72 = arith.divf %70, %71 : vector<1x256xf32>
    %cst_39 = arith.constant 1.000000e+00 : f32
    %73 = vector.broadcast %cst_39 : f32 to vector<1x256xf32>
    %74 = arith.addf %72, %73 : vector<1x256xf32>
    %cst_40 = arith.constant 0.000000e+00 : f32
    %75 = vector.broadcast %cst_40 : f32 to vector<1x256xf32>
    %c0_i32_41 = arith.constant 0 : i32
    %c64_i32_42 = arith.constant 64 : i32
    %76 = arith.muli %c0_i32_41, %c64_i32_42 : i32
    %77 = tpu.assume_multiple %76, 64 : i32
    %c1_43 = arith.constant 1 : index
    %78 = arith.index_cast %77 : i32 to index
    %c0_44 = arith.constant 0 : index
    %79 = vector.load %arg2[%c1_43, %78, %c0_44] : memref<2x64x256xbf16, #tpu.memory_space<vmem>>, vector<1x64x256xbf16>
    %80 = vector.shape_cast %79 : vector<1x64x256xbf16> to vector<64x256xbf16>
    %cst_45 = arith.constant dense<0.000000e+00> : vector<64x256xf32>
    %81 = tpu.matmul %80, %50, %cst_45 {dimension_numbers = #tpu.dot_dimension_numbers<[1], [0], [0], [1], [0, 0, 1, 1], [], []>} : vector<64x256xbf16>, vector<256x256xbf16>, vector<64x256xf32> -> vector<64x256xf32>
    %82 = vector.broadcast %51 : vector<1x256xf32> to vector<64x256xf32>
    %83 = arith.addf %81, %82 : vector<64x256xf32>
    %cst_46 = arith.constant 0.000000e+00 : f32
    %84 = vector.broadcast %cst_46 : f32 to vector<64x256xf32>
    %85 = arith.maximumf %83, %84 : vector<64x256xf32>
    %cst_47 = arith.constant dense<0.000000e+00> : vector<256xf32>
    %86 = vector.multi_reduction <add>, %85, %cst_47 [0] : vector<64x256xf32> to vector<256xf32>
    %87 = vector.shape_cast %86 : vector<256xf32> to vector<1x256xf32>
    %88 = arith.addf %75, %87 : vector<1x256xf32>
    %c1_i32_48 = arith.constant 1 : i32
    %cst_49 = arith.constant 1.562500e-02 : f32
    %89 = vector.broadcast %cst_49 : f32 to vector<1x256xf32>
    %90 = arith.mulf %88, %89 : vector<1x256xf32>
    %91 = arith.negf %90 : vector<1x256xf32>
    %92 = math.exp %91 : vector<1x256xf32>
    %cst_50 = arith.constant 1.000000e+00 : f32
    %93 = vector.broadcast %cst_50 : f32 to vector<1x256xf32>
    %94 = arith.addf %93, %92 : vector<1x256xf32>
    %95 = arith.divf %93, %94 : vector<1x256xf32>
    %cst_51 = arith.constant 1.000000e+00 : f32
    %96 = vector.broadcast %cst_51 : f32 to vector<1x256xf32>
    %97 = arith.addf %95, %96 : vector<1x256xf32>
    %c2 = arith.constant 2 : index
    %c0_52 = arith.constant 0 : index
    %c0_53 = arith.constant 0 : index
    %98 = vector.load %arg5[%c2, %c0_52, %c0_53] : memref<4x256x256xbf16, #tpu.memory_space<vmem>>, vector<1x256x256xbf16>
    %99 = vector.shape_cast %98 : vector<1x256x256xbf16> to vector<256x256xbf16>
    %c2_54 = arith.constant 2 : index
    %c0_55 = arith.constant 0 : index
    %100 = vector.load %arg6[%c2_54, %c0_55] : memref<4x256xf32, #tpu.memory_space<vmem>>, vector<1x256xf32>
    %cst_56 = arith.constant 0.000000e+00 : f32
    %101 = vector.broadcast %cst_56 : f32 to vector<1x256xf32>
    %c0_i32_57 = arith.constant 0 : i32
    %c64_i32_58 = arith.constant 64 : i32
    %102 = arith.muli %c0_i32_57, %c64_i32_58 : i32
    %103 = tpu.assume_multiple %102, 64 : i32
    %c0_59 = arith.constant 0 : index
    %104 = arith.index_cast %103 : i32 to index
    %c0_60 = arith.constant 0 : index
    %105 = vector.load %arg3[%c0_59, %104, %c0_60] : memref<2x64x256xbf16, #tpu.memory_space<vmem>>, vector<1x64x256xbf16>
    %106 = vector.shape_cast %105 : vector<1x64x256xbf16> to vector<64x256xbf16>
    %cst_61 = arith.constant dense<0.000000e+00> : vector<64x256xf32>
    %107 = tpu.matmul %106, %99, %cst_61 {dimension_numbers = #tpu.dot_dimension_numbers<[1], [0], [0], [1], [0, 0, 1, 1], [], []>} : vector<64x256xbf16>, vector<256x256xbf16>, vector<64x256xf32> -> vector<64x256xf32>
    %108 = vector.broadcast %100 : vector<1x256xf32> to vector<64x256xf32>
    %109 = arith.addf %107, %108 : vector<64x256xf32>
    %cst_62 = arith.constant 0.000000e+00 : f32
    %110 = vector.broadcast %cst_62 : f32 to vector<64x256xf32>
    %111 = arith.maximumf %109, %110 : vector<64x256xf32>
    %cst_63 = arith.constant dense<0.000000e+00> : vector<256xf32>
    %112 = vector.multi_reduction <add>, %111, %cst_63 [0] : vector<64x256xf32> to vector<256xf32>
    %113 = vector.shape_cast %112 : vector<256xf32> to vector<1x256xf32>
    %114 = arith.addf %101, %113 : vector<1x256xf32>
    %c1_i32_64 = arith.constant 1 : i32
    %cst_65 = arith.constant 1.562500e-02 : f32
    %115 = vector.broadcast %cst_65 : f32 to vector<1x256xf32>
    %116 = arith.mulf %114, %115 : vector<1x256xf32>
    %117 = arith.negf %116 : vector<1x256xf32>
    %118 = math.exp %117 : vector<1x256xf32>
    %cst_66 = arith.constant 1.000000e+00 : f32
    %119 = vector.broadcast %cst_66 : f32 to vector<1x256xf32>
    %120 = arith.addf %119, %118 : vector<1x256xf32>
    %121 = arith.divf %119, %120 : vector<1x256xf32>
    %cst_67 = arith.constant 1.000000e+00 : f32
    %122 = vector.broadcast %cst_67 : f32 to vector<1x256xf32>
    %123 = arith.addf %121, %122 : vector<1x256xf32>
    %cst_68 = arith.constant 0.000000e+00 : f32
    %124 = vector.broadcast %cst_68 : f32 to vector<1x256xf32>
    %c0_i32_69 = arith.constant 0 : i32
    %c64_i32_70 = arith.constant 64 : i32
    %125 = arith.muli %c0_i32_69, %c64_i32_70 : i32
    %126 = tpu.assume_multiple %125, 64 : i32
    %c1_71 = arith.constant 1 : index
    %127 = arith.index_cast %126 : i32 to index
    %c0_72 = arith.constant 0 : index
    %128 = vector.load %arg3[%c1_71, %127, %c0_72] : memref<2x64x256xbf16, #tpu.memory_space<vmem>>, vector<1x64x256xbf16>
    %129 = vector.shape_cast %128 : vector<1x64x256xbf16> to vector<64x256xbf16>
    %cst_73 = arith.constant dense<0.000000e+00> : vector<64x256xf32>
    %130 = tpu.matmul %129, %99, %cst_73 {dimension_numbers = #tpu.dot_dimension_numbers<[1], [0], [0], [1], [0, 0, 1, 1], [], []>} : vector<64x256xbf16>, vector<256x256xbf16>, vector<64x256xf32> -> vector<64x256xf32>
    %131 = vector.broadcast %100 : vector<1x256xf32> to vector<64x256xf32>
    %132 = arith.addf %130, %131 : vector<64x256xf32>
    %cst_74 = arith.constant 0.000000e+00 : f32
    %133 = vector.broadcast %cst_74 : f32 to vector<64x256xf32>
    %134 = arith.maximumf %132, %133 : vector<64x256xf32>
    %cst_75 = arith.constant dense<0.000000e+00> : vector<256xf32>
    %135 = vector.multi_reduction <add>, %134, %cst_75 [0] : vector<64x256xf32> to vector<256xf32>
    %136 = vector.shape_cast %135 : vector<256xf32> to vector<1x256xf32>
    %137 = arith.addf %124, %136 : vector<1x256xf32>
    %c1_i32_76 = arith.constant 1 : i32
    %cst_77 = arith.constant 1.562500e-02 : f32
    %138 = vector.broadcast %cst_77 : f32 to vector<1x256xf32>
    %139 = arith.mulf %137, %138 : vector<1x256xf32>
    %140 = arith.negf %139 : vector<1x256xf32>
    %141 = math.exp %140 : vector<1x256xf32>
    %cst_78 = arith.constant 1.000000e+00 : f32
    %142 = vector.broadcast %cst_78 : f32 to vector<1x256xf32>
    %143 = arith.addf %142, %141 : vector<1x256xf32>
    %144 = arith.divf %142, %143 : vector<1x256xf32>
    %cst_79 = arith.constant 1.000000e+00 : f32
    %145 = vector.broadcast %cst_79 : f32 to vector<1x256xf32>
    %146 = arith.addf %144, %145 : vector<1x256xf32>
    %c3 = arith.constant 3 : index
    %c0_80 = arith.constant 0 : index
    %c0_81 = arith.constant 0 : index
    %147 = vector.load %arg5[%c3, %c0_80, %c0_81] : memref<4x256x256xbf16, #tpu.memory_space<vmem>>, vector<1x256x256xbf16>
    %148 = vector.shape_cast %147 : vector<1x256x256xbf16> to vector<256x256xbf16>
    %c3_82 = arith.constant 3 : index
    %c0_83 = arith.constant 0 : index
    %149 = vector.load %arg6[%c3_82, %c0_83] : memref<4x256xf32, #tpu.memory_space<vmem>>, vector<1x256xf32>
    %cst_84 = arith.constant 0.000000e+00 : f32
    %150 = vector.broadcast %cst_84 : f32 to vector<1x256xf32>
    %c0_i32_85 = arith.constant 0 : i32
    %c64_i32_86 = arith.constant 64 : i32
    %151 = arith.muli %c0_i32_85, %c64_i32_86 : i32
    %152 = tpu.assume_multiple %151, 64 : i32
    %c0_87 = arith.constant 0 : index
    %153 = arith.index_cast %152 : i32 to index
    %c0_88 = arith.constant 0 : index
    %154 = vector.load %arg4[%c0_87, %153, %c0_88] : memref<2x64x256xbf16, #tpu.memory_space<vmem>>, vector<1x64x256xbf16>
    %155 = vector.shape_cast %154 : vector<1x64x256xbf16> to vector<64x256xbf16>
    %cst_89 = arith.constant dense<0.000000e+00> : vector<64x256xf32>
    %156 = tpu.matmul %155, %148, %cst_89 {dimension_numbers = #tpu.dot_dimension_numbers<[1], [0], [0], [1], [0, 0, 1, 1], [], []>} : vector<64x256xbf16>, vector<256x256xbf16>, vector<64x256xf32> -> vector<64x256xf32>
    %157 = vector.broadcast %149 : vector<1x256xf32> to vector<64x256xf32>
    %158 = arith.addf %156, %157 : vector<64x256xf32>
    %cst_90 = arith.constant 0.000000e+00 : f32
    %159 = vector.broadcast %cst_90 : f32 to vector<64x256xf32>
    %160 = arith.maximumf %158, %159 : vector<64x256xf32>
    %cst_91 = arith.constant dense<0.000000e+00> : vector<256xf32>
    %161 = vector.multi_reduction <add>, %160, %cst_91 [0] : vector<64x256xf32> to vector<256xf32>
    %162 = vector.shape_cast %161 : vector<256xf32> to vector<1x256xf32>
    %163 = arith.addf %150, %162 : vector<1x256xf32>
    %c1_i32_92 = arith.constant 1 : i32
    %cst_93 = arith.constant 1.562500e-02 : f32
    %164 = vector.broadcast %cst_93 : f32 to vector<1x256xf32>
    %165 = arith.mulf %163, %164 : vector<1x256xf32>
    %166 = arith.negf %165 : vector<1x256xf32>
    %167 = math.exp %166 : vector<1x256xf32>
    %cst_94 = arith.constant 1.000000e+00 : f32
    %168 = vector.broadcast %cst_94 : f32 to vector<1x256xf32>
    %169 = arith.addf %168, %167 : vector<1x256xf32>
    %170 = arith.divf %168, %169 : vector<1x256xf32>
    %cst_95 = arith.constant 1.000000e+00 : f32
    %171 = vector.broadcast %cst_95 : f32 to vector<1x256xf32>
    %172 = arith.addf %170, %171 : vector<1x256xf32>
    %cst_96 = arith.constant 0.000000e+00 : f32
    %173 = vector.broadcast %cst_96 : f32 to vector<1x256xf32>
    %c0_i32_97 = arith.constant 0 : i32
    %c64_i32_98 = arith.constant 64 : i32
    %174 = arith.muli %c0_i32_97, %c64_i32_98 : i32
    %175 = tpu.assume_multiple %174, 64 : i32
    %c1_99 = arith.constant 1 : index
    %176 = arith.index_cast %175 : i32 to index
    %c0_100 = arith.constant 0 : index
    %177 = vector.load %arg4[%c1_99, %176, %c0_100] : memref<2x64x256xbf16, #tpu.memory_space<vmem>>, vector<1x64x256xbf16>
    %178 = vector.shape_cast %177 : vector<1x64x256xbf16> to vector<64x256xbf16>
    %cst_101 = arith.constant dense<0.000000e+00> : vector<64x256xf32>
    %179 = tpu.matmul %178, %148, %cst_101 {dimension_numbers = #tpu.dot_dimension_numbers<[1], [0], [0], [1], [0, 0, 1, 1], [], []>} : vector<64x256xbf16>, vector<256x256xbf16>, vector<64x256xf32> -> vector<64x256xf32>
    %180 = vector.broadcast %149 : vector<1x256xf32> to vector<64x256xf32>
    %181 = arith.addf %179, %180 : vector<64x256xf32>
    %cst_102 = arith.constant 0.000000e+00 : f32
    %182 = vector.broadcast %cst_102 : f32 to vector<64x256xf32>
    %183 = arith.maximumf %181, %182 : vector<64x256xf32>
    %cst_103 = arith.constant dense<0.000000e+00> : vector<256xf32>
    %184 = vector.multi_reduction <add>, %183, %cst_103 [0] : vector<64x256xf32> to vector<256xf32>
    %185 = vector.shape_cast %184 : vector<256xf32> to vector<1x256xf32>
    %186 = arith.addf %173, %185 : vector<1x256xf32>
    %c1_i32_104 = arith.constant 1 : i32
    %cst_105 = arith.constant 1.562500e-02 : f32
    %187 = vector.broadcast %cst_105 : f32 to vector<1x256xf32>
    %188 = arith.mulf %186, %187 : vector<1x256xf32>
    %189 = arith.negf %188 : vector<1x256xf32>
    %190 = math.exp %189 : vector<1x256xf32>
    %cst_106 = arith.constant 1.000000e+00 : f32
    %191 = vector.broadcast %cst_106 : f32 to vector<1x256xf32>
    %192 = arith.addf %191, %190 : vector<1x256xf32>
    %193 = arith.divf %191, %192 : vector<1x256xf32>
    %cst_107 = arith.constant 1.000000e+00 : f32
    %194 = vector.broadcast %cst_107 : f32 to vector<1x256xf32>
    %195 = arith.addf %193, %194 : vector<1x256xf32>
    %c0_i32_108 = arith.constant 0 : i32
    %c64_i32_109 = arith.constant 64 : i32
    %196 = arith.muli %c0_i32_108, %c64_i32_109 : i32
    %197 = tpu.assume_multiple %196, 64 : i32
    %c0_110 = arith.constant 0 : index
    %198 = arith.index_cast %197 : i32 to index
    %c0_111 = arith.constant 0 : index
    %199 = vector.load %arg1[%c0_110, %198, %c0_111] : memref<2x64x256xbf16, #tpu.memory_space<vmem>>, vector<1x64x256xbf16>
    %200 = vector.shape_cast %199 : vector<1x64x256xbf16> to vector<64x256xbf16>
    %201 = arith.extf %200 : vector<64x256xbf16> to vector<64x256xf32>
    %202 = vector.broadcast %25 : vector<1x256xf32> to vector<64x256xf32>
    %203 = arith.mulf %201, %202 : vector<64x256xf32>
    %c0_112 = arith.constant 0 : index
    %204 = arith.index_cast %197 : i32 to index
    %c0_113 = arith.constant 0 : index
    %205 = vector.load %arg2[%c0_112, %204, %c0_113] : memref<2x64x256xbf16, #tpu.memory_space<vmem>>, vector<1x64x256xbf16>
    %206 = vector.shape_cast %205 : vector<1x64x256xbf16> to vector<64x256xbf16>
    %207 = arith.extf %206 : vector<64x256xbf16> to vector<64x256xf32>
    %208 = vector.broadcast %74 : vector<1x256xf32> to vector<64x256xf32>
    %209 = arith.mulf %207, %208 : vector<64x256xf32>
    %210 = arith.addf %203, %209 : vector<64x256xf32>
    %c0_114 = arith.constant 0 : index
    %211 = arith.index_cast %197 : i32 to index
    %c0_115 = arith.constant 0 : index
    %212 = vector.load %arg3[%c0_114, %211, %c0_115] : memref<2x64x256xbf16, #tpu.memory_space<vmem>>, vector<1x64x256xbf16>
    %213 = vector.shape_cast %212 : vector<1x64x256xbf16> to vector<64x256xbf16>
    %214 = arith.extf %213 : vector<64x256xbf16> to vector<64x256xf32>
    %215 = vector.broadcast %123 : vector<1x256xf32> to vector<64x256xf32>
    %216 = arith.mulf %214, %215 : vector<64x256xf32>
    %217 = arith.addf %210, %216 : vector<64x256xf32>
    %c0_116 = arith.constant 0 : index
    %218 = arith.index_cast %197 : i32 to index
    %c0_117 = arith.constant 0 : index
    %219 = vector.load %arg4[%c0_116, %218, %c0_117] : memref<2x64x256xbf16, #tpu.memory_space<vmem>>, vector<1x64x256xbf16>
    %220 = vector.shape_cast %219 : vector<1x64x256xbf16> to vector<64x256xbf16>
    %221 = arith.extf %220 : vector<64x256xbf16> to vector<64x256xf32>
    %222 = vector.broadcast %172 : vector<1x256xf32> to vector<64x256xf32>
    %223 = arith.mulf %221, %222 : vector<64x256xf32>
    %224 = arith.addf %217, %223 : vector<64x256xf32>
    %c0_118 = arith.constant 0 : index
    %225 = arith.index_cast %197 : i32 to index
    %c0_119 = arith.constant 0 : index
    %226 = vector.load %arg7[%c0_118, %225, %c0_119] : memref<2x64x256xf32, #tpu.memory_space<vmem>>, vector<1x64x256xf32>
    %227 = vector.shape_cast %226 : vector<1x64x256xf32> to vector<64x256xf32>
    %228 = vector.shape_cast %224 : vector<64x256xf32> to vector<1x64x256xf32>
    tpu.vector_store %arg7[%c0_118, %225, %c0_119], %228 {strides = array<i32>} : memref<2x64x256xf32, #tpu.memory_space<vmem>>, vector<1x64x256xf32>,
    %c1_i32_120 = arith.constant 1 : i32
    %c0_i32_121 = arith.constant 0 : i32
    %c64_i32_122 = arith.constant 64 : i32
    %229 = arith.muli %c0_i32_121, %c64_i32_122 : i32
    %230 = tpu.assume_multiple %229, 64 : i32
    %c1_123 = arith.constant 1 : index
    %231 = arith.index_cast %230 : i32 to index
    %c0_124 = arith.constant 0 : index
    %232 = vector.load %arg1[%c1_123, %231, %c0_124] : memref<2x64x256xbf16, #tpu.memory_space<vmem>>, vector<1x64x256xbf16>
    %233 = vector.shape_cast %232 : vector<1x64x256xbf16> to vector<64x256xbf16>
    %234 = arith.extf %233 : vector<64x256xbf16> to vector<64x256xf32>
    %235 = vector.broadcast %48 : vector<1x256xf32> to vector<64x256xf32>
    %236 = arith.mulf %234, %235 : vector<64x256xf32>
    %c1_125 = arith.constant 1 : index
    %237 = arith.index_cast %230 : i32 to index
    %c0_126 = arith.constant 0 : index
    %238 = vector.load %arg2[%c1_125, %237, %c0_126] : memref<2x64x256xbf16, #tpu.memory_space<vmem>>, vector<1x64x256xbf16>
    %239 = vector.shape_cast %238 : vector<1x64x256xbf16> to vector<64x256xbf16>
    %240 = arith.extf %239 : vector<64x256xbf16> to vector<64x256xf32>
    %241 = vector.broadcast %97 : vector<1x256xf32> to vector<64x256xf32>
    %242 = arith.mulf %240, %241 : vector<64x256xf32>
    %243 = arith.addf %236, %242 : vector<64x256xf32>
    %c1_127 = arith.constant 1 : index
    %244 = arith.index_cast %230 : i32 to index
    %c0_128 = arith.constant 0 : index
    %245 = vector.load %arg3[%c1_127, %244, %c0_128] : memref<2x64x256xbf16, #tpu.memory_space<vmem>>, vector<1x64x256xbf16>
    %246 = vector.shape_cast %245 : vector<1x64x256xbf16> to vector<64x256xbf16>
    %247 = arith.extf %246 : vector<64x256xbf16> to vector<64x256xf32>
    %248 = vector.broadcast %146 : vector<1x256xf32> to vector<64x256xf32>
    %249 = arith.mulf %247, %248 : vector<64x256xf32>
    %250 = arith.addf %243, %249 : vector<64x256xf32>
    %c1_129 = arith.constant 1 : index
    %251 = arith.index_cast %230 : i32 to index
    %c0_130 = arith.constant 0 : index
    %252 = vector.load %arg4[%c1_129, %251, %c0_130] : memref<2x64x256xbf16, #tpu.memory_space<vmem>>, vector<1x64x256xbf16>
    %253 = vector.shape_cast %252 : vector<1x64x256xbf16> to vector<64x256xbf16>
    %254 = arith.extf %253 : vector<64x256xbf16> to vector<64x256xf32>
    %255 = vector.broadcast %195 : vector<1x256xf32> to vector<64x256xf32>
    %256 = arith.mulf %254, %255 : vector<64x256xf32>
    %257 = arith.addf %250, %256 : vector<64x256xf32>
    %c1_131 = arith.constant 1 : index
    %258 = arith.index_cast %230 : i32 to index
    %c0_132 = arith.constant 0 : index
    %259 = vector.load %arg7[%c1_131, %258, %c0_132] : memref<2x64x256xf32, #tpu.memory_space<vmem>>, vector<1x64x256xf32>
    %260 = vector.shape_cast %259 : vector<1x64x256xf32> to vector<64x256xf32>
    %261 = vector.shape_cast %257 : vector<64x256xf32> to vector<1x64x256xf32>
    tpu.vector_store %arg7[%c1_131, %258, %c0_132], %261 {strides = array<i32>} : memref<2x64x256xf32, #tpu.memory_space<vmem>>, vector<1x64x256xf32>,
    %c1_i32_133 = arith.constant 1 : i32
    return
  }
  func.func @transform_0(%arg0: i32) -> (i32, i32, i32) {
    %c0_i32 = arith.constant 0 : i32
    %c0_i32_0 = arith.constant 0 : i32
    %c0_i32_1 = arith.constant 0 : i32
    return %arg0, %c0_i32, %c0_i32_0 : i32, i32, i32
  }
  func.func @transform_1(%arg0: i32) -> (i32, i32, i32) {
    %c0_i32 = arith.constant 0 : i32
    %c0_i32_0 = arith.constant 0 : i32
    %c0_i32_1 = arith.constant 0 : i32
    return %arg0, %c0_i32, %c0_i32_0 : i32, i32, i32
  }
  func.func @transform_2(%arg0: i32) -> (i32, i32, i32) {
    %c0_i32 = arith.constant 0 : i32
    %c0_i32_0 = arith.constant 0 : i32
    %c0_i32_1 = arith.constant 0 : i32
    return %arg0, %c0_i32, %c0_i32_0 : i32, i32, i32
  }
  func.func @transform_3(%arg0: i32) -> (i32, i32, i32) {
    %c0_i32 = arith.constant 0 : i32
    %c0_i32_0 = arith.constant 0 : i32
    %c0_i32_1 = arith.constant 0 : i32
    return %arg0, %c0_i32, %c0_i32_0 : i32, i32, i32
  }
  func.func @transform_4(%arg0: i32) -> (i32, i32, i32) {
    %c0_i32 = arith.constant 0 : i32
    %c0_i32_0 = arith.constant 0 : i32
    %c0_i32_1 = arith.constant 0 : i32
    %c0_i32_2 = arith.constant 0 : i32
    return %c0_i32, %c0_i32_0, %c0_i32_1 : i32, i32, i32
  }
  func.func @transform_5(%arg0: i32) -> (i32, i32) {
    %c0_i32 = arith.constant 0 : i32
    %c0_i32_0 = arith.constant 0 : i32
    %c0_i32_1 = arith.constant 0 : i32
    return %c0_i32, %c0_i32_0 : i32, i32
  }
  func.func @transform_6(%arg0: i32) -> (i32, i32, i32) {
    %c0_i32 = arith.constant 0 : i32
    %c0_i32_0 = arith.constant 0 : i32
    %c0_i32_1 = arith.constant 0 : i32
    return %arg0, %c0_i32, %c0_i32_0 : i32, i32, i32
  }
}

</mosaic_0001>

<llo_original>
// kernel: mlfusion.1
$region0: #{mlfusion.1}
  #allocation0 [shape = 'u32[]', space=smem, size = 0x4, offset = 0x4, fixed_abs, tag = 'smem constant byte address 0x4 - core index']
  #allocation1 [shape = 'u32[144,128]{1,0:T(1,128)}', space=vmem, size = 0x12000, scoped, tag = 'internal scratch']
  %s0 = inlined_call_operand.vmem [shape: bf16[2,64,256], index: 0, kind: input, shape index: {}]
  %s1 = inlined_call_operand.vmem [shape: bf16[2,64,256], index: 1, kind: input, shape index: {}]
  %s2 = inlined_call_operand.vmem [shape: bf16[2,64,256], index: 2, kind: input, shape index: {}]
  %s3 = inlined_call_operand.vmem [shape: bf16[2,64,256], index: 3, kind: input, shape index: {}]
  %s4 = inlined_call_operand.vmem [shape: bf16[4,256,256], index: 4, kind: input, shape index: {}]
  %s5 = inlined_call_operand.vmem [shape: f32[4,256], index: 5, kind: input, shape index: {}]
  %s6 = inlined_call_operand.hbm [shape: f32[2,64,256], index: 6, kind: output, shape index: {}]
  %s7 = sld [smem:[#allocation0]]
  $region34: #{mlfusion.1} parent=0
    _
  %s9 = ssub.s32 1, %s7
  %s10 = scalar_select 0, %s9, %s7
  $region1: #{mlfusion.1} parent=0
    #allocation2 [shape = 'u8[131072]{0}', space=vmem, size = 0x20000, scoped, tag = 'output window, operand 0, single buffered']
    #allocation3 [shape = 's32[1]{0}', space=sflag, size = 0x4, scoped, tag = 'scoped memory for mlfusion.1']
    %11 = vsyncpa [#allocation3], 0
    // Predicated region
    $region2: #{mlfusion.1} parent=1 // pred_check
      _
    $region3: #{mlfusion.1} parent=1 // pred_check_branch
      %13 = sbr.rel (0) target = $region5
    $region4: #{mlfusion.1} parent=1 // pred_region
      _
    $region5: #{mlfusion.1} parent=1 // pred_fallthru
      _
    // Predicated region
    $region6: #{mlfusion.1} parent=1 // pred_check
      _
    $region7: #{mlfusion.1} parent=1 // pred_check_branch
      %15 = sbr.rel (0) target = $region9
    $region8: #{mlfusion.1} parent=1 // pred_region
      _
    $region9: #{mlfusion.1} parent=1 // pred_fallthru
      _
    // Predicated region
    $region10: #{mlfusion.1} parent=1 // pred_check
      _
    $region11: #{mlfusion.1} parent=1 // pred_check_branch
      %17 = sbr.rel (0) target = $region13
    $region12: #{mlfusion.1} parent=1 // pred_region
      _
    $region13: #{mlfusion.1} parent=1 // pred_fallthru
      _
    // Predicated region
    $region14: #{mlfusion.1} parent=1 // pred_check
      _
    $region15: #{mlfusion.1} parent=1 // pred_check_branch
      %19 = sbr.rel (0) target = $region17
    $region16: #{mlfusion.1} parent=1 // pred_region
      _
    $region17: #{mlfusion.1} parent=1 // pred_fallthru
      _
    // Predicated region
    $region18: #{mlfusion.1} parent=1 // pred_check
      _
    $region19: #{mlfusion.1} parent=1 // pred_check_branch
      %21 = sbr.rel (0) target = $region21
    $region20: #{mlfusion.1} parent=1 // pred_region
      _
    $region21: #{mlfusion.1} parent=1 // pred_fallthru
      _
    // Predicated region
    $region22: #{mlfusion.1} parent=1 // pred_check
      _
    $region23: #{mlfusion.1} parent=1 // pred_check_branch
      %23 = sbr.rel (0) target = $region25
    $region24: #{mlfusion.1} parent=1 // pred_region
      _
    $region25: #{mlfusion.1} parent=1 // pred_fallthru
      _
    %v24 = vld [vmem:[%s4] sm:$0xff]
    %v25 = vld [vmem:[%s4 + $0x8] sm:$0xff]
    %v26 = vld [vmem:[%s4 + $0x10] sm:$0xff]
    %v27 = vld [vmem:[%s4 + $0x18] sm:$0xff]
    %v28 = vld [vmem:[%s4 + $0x20] sm:$0xff]
    %v29 = vld [vmem:[%s4 + $0x28] sm:$0xff]
    %v30 = vld [vmem:[%s4 + $0x30] sm:$0xff]
    %v31 = vld [vmem:[%s4 + $0x38] sm:$0xff]
    %v32 = vld [vmem:[%s4 + $0x40] sm:$0xff]
    %v33 = vld [vmem:[%s4 + $0x48] sm:$0xff]
    %v34 = vld [vmem:[%s4 + $0x50] sm:$0xff]
    %v35 = vld [vmem:[%s4 + $0x58] sm:$0xff]
    %v36 = vld [vmem:[%s4 + $0x60] sm:$0xff]
    %v37 = vld [vmem:[%s4 + $0x68] sm:$0xff]
    %v38 = vld [vmem:[%s4 + $0x70] sm:$0xff]
    %v39 = vld [vmem:[%s4 + $0x78] sm:$0xff]
    %v40 = vld [vmem:[%s4 + $0x80] sm:$0xff]
    %v41 = vld [vmem:[%s4 + $0x88] sm:$0xff]
    %v42 = vld [vmem:[%s4 + $0x90] sm:$0xff]
    %v43 = vld [vmem:[%s4 + $0x98] sm:$0xff]
    %v44 = vld [vmem:[%s4 + $0xa0] sm:$0xff]
    %v45 = vld [vmem:[%s4 + $0xa8] sm:$0xff]
    %v46 = vld [vmem:[%s4 + $0xb0] sm:$0xff]
    %v47 = vld [vmem:[%s4 + $0xb8] sm:$0xff]
    %v48 = vld [vmem:[%s4 + $0xc0] sm:$0xff]
    %v49 = vld [vmem:[%s4 + $0xc8] sm:$0xff]
    %v50 = vld [vmem:[%s4 + $0xd0] sm:$0xff]
    %v51 = vld [vmem:[%s4 + $0xd8] sm:$0xff]
    %v52 = vld [vmem:[%s4 + $0xe0] sm:$0xff]
    %v53 = vld [vmem:[%s4 + $0xe8] sm:$0xff]
    %v54 = vld [vmem:[%s4 + $0xf0] sm:$0xff]
    %v55 = vld [vmem:[%s4 + $0xf8] sm:$0xff]
    %v56 = vld [vmem:[%s5] ss:$4 sm:$0x3]
    %s57 = smul.u32 0, 2
    %s58 = smul.addr %s57, 4
    %s59 = scalar_lea.vmem %s0, %s58
    %v60 = vld [vmem:[%s59] sm:$0xff]
    %v61 = vld [vmem:[%s59 + $0x8] sm:$0xff]
    %v62 = vld [vmem:[%s59 + $0x10] sm:$0xff]
    %v63 = vld [vmem:[%s59 + $0x18] sm:$0xff]
    %v64 = vld [vmem:[%s59 + $0x20] sm:$0xff]
    %v65 = vld [vmem:[%s59 + $0x28] sm:$0xff]
    %v66 = vld [vmem:[%s59 + $0x30] sm:$0xff]
    %v67 = vld [vmem:[%s59 + $0x38] sm:$0xff]
    %v69 = vlaneseq
    %v70 = vshrl.u32 %v69, 7
    %v71 = vsub.s32 0, %v70
    %v72 = vrot.slane %v56, %v71
    %v73 = vlaneseq
    %v74 = vshrl.u32 %v73, 7
    %v75 = vsub.s32 1, %v74
    %v76 = vrot.slane %v56, %v75
    %v87 = vunpack.c.l.b16 %v60
    %v88 = vunpack.c.h.b16 %v60
    %v89 = vunpack.c.l.b16 %v61
    %v90 = vunpack.c.h.b16 %v61
    %v91 = vunpack.c.l.b16 %v62
    %v92 = vunpack.c.h.b16 %v62
    %v93 = vunpack.c.l.b16 %v63
    %v94 = vunpack.c.h.b16 %v63
    %v95 = vunpack.c.l.b16 %v64
    %v96 = vunpack.c.h.b16 %v64
    %v97 = vunpack.c.l.b16 %v65
    %v98 = vunpack.c.h.b16 %v65
    %v99 = vunpack.c.l.b16 %v66
    %v100 = vunpack.c.h.b16 %v66
    %v101 = vunpack.c.l.b16 %v67
    %v102 = vunpack.c.h.b16 %v67
    %v103 = vpack.c.b16 %v89, %v87
    %v104 = vpack.c.b16 %v90, %v88
    %v105 = vpack.c.b16 %v93, %v91
    %v106 = vpack.c.b16 %v94, %v92
    %v107 = vpack.c.b16 %v97, %v95
    %v108 = vpack.c.b16 %v98, %v96
    %v109 = vpack.c.b16 %v101, %v99
    %v110 = vpack.c.b16 %v102, %v100
    %v151 = vunpack.c.l.b16 %v24
    %v152 = vunpack.c.h.b16 %v24
    %v153 = vunpack.c.l.b16 %v25
    %v154 = vunpack.c.h.b16 %v25
    %v155 = vunpack.c.l.b16 %v26
    %v156 = vunpack.c.h.b16 %v26
    %v157 = vunpack.c.l.b16 %v27
    %v158 = vunpack.c.h.b16 %v27
    %v159 = vunpack.c.l.b16 %v28
    %v160 = vunpack.c.h.b16 %v28
    %v161 = vunpack.c.l.b16 %v29
    %v162 = vunpack.c.h.b16 %v29
    %v163 = vunpack.c.l.b16 %v30
    %v164 = vunpack.c.h.b16 %v30
    %v165 = vunpack.c.l.b16 %v31
    %v166 = vunpack.c.h.b16 %v31
    %v167 = vunpack.c.l.b16 %v32
    %v168 = vunpack.c.h.b16 %v32
    %v169 = vunpack.c.l.b16 %v33
    %v170 = vunpack.c.h.b16 %v33
    %v171 = vunpack.c.l.b16 %v34
    %v172 = vunpack.c.h.b16 %v34
    %v173 = vunpack.c.l.b16 %v35
    %v174 = vunpack.c.h.b16 %v35
    %v175 = vunpack.c.l.b16 %v36
    %v176 = vunpack.c.h.b16 %v36
    %v177 = vunpack.c.l.b16 %v37
    %v178 = vunpack.c.h.b16 %v37
    %v179 = vunpack.c.l.b16 %v38
    %v180 = vunpack.c.h.b16 %v38
    %v181 = vunpack.c.l.b16 %v39
    %v182 = vunpack.c.h.b16 %v39
    %v183 = vunpack.c.l.b16 %v40
    %v184 = vunpack.c.h.b16 %v40
    %v185 = vunpack.c.l.b16 %v41
    %v186 = vunpack.c.h.b16 %v41
    %v187 = vunpack.c.l.b16 %v42
    %v188 = vunpack.c.h.b16 %v42
    %v189 = vunpack.c.l.b16 %v43
    %v190 = vunpack.c.h.b16 %v43
    %v191 = vunpack.c.l.b16 %v44
    %v192 = vunpack.c.h.b16 %v44
    %v193 = vunpack.c.l.b16 %v45
    %v194 = vunpack.c.h.b16 %v45
    %v195 = vunpack.c.l.b16 %v46
    %v196 = vunpack.c.h.b16 %v46
    %v197 = vunpack.c.l.b16 %v47
    %v198 = vunpack.c.h.b16 %v47
    %v199 = vunpack.c.l.b16 %v48
    %v200 = vunpack.c.h.b16 %v48
    %v201 = vunpack.c.l.b16 %v49
    %v202 = vunpack.c.h.b16 %v49
    %v203 = vunpack.c.l.b16 %v50
    %v204 = vunpack.c.h.b16 %v50
    %v205 = vunpack.c.l.b16 %v51
    %v206 = vunpack.c.h.b16 %v51
    %v207 = vunpack.c.l.b16 %v52
    %v208 = vunpack.c.h.b16 %v52
    %v209 = vunpack.c.l.b16 %v53
    %v210 = vunpack.c.h.b16 %v53
    %v211 = vunpack.c.l.b16 %v54
    %v212 = vunpack.c.h.b16 %v54
    %v213 = vunpack.c.l.b16 %v55
    %v214 = vunpack.c.h.b16 %v55
    %v215 = vpack.c.b16 %v153, %v151
    %v216 = vpack.c.b16 %v154, %v152
    %v217 = vpack.c.b16 %v157, %v155
    %v218 = vpack.c.b16 %v158, %v156
    %v219 = vpack.c.b16 %v161, %v159
    %v220 = vpack.c.b16 %v162, %v160
    %v221 = vpack.c.b16 %v165, %v163
    %v222 = vpack.c.b16 %v166, %v164
    %v223 = vpack.c.b16 %v169, %v167
    %v224 = vpack.c.b16 %v170, %v168
    %v225 = vpack.c.b16 %v173, %v171
    %v226 = vpack.c.b16 %v174, %v172
    %v227 = vpack.c.b16 %v177, %v175
    %v228 = vpack.c.b16 %v178, %v176
    %v229 = vpack.c.b16 %v181, %v179
    %v230 = vpack.c.b16 %v182, %v180
    %v231 = vpack.c.b16 %v185, %v183
    %v232 = vpack.c.b16 %v186, %v184
    %v233 = vpack.c.b16 %v189, %v187
    %v234 = vpack.c.b16 %v190, %v188
    %v235 = vpack.c.b16 %v193, %v191
    %v236 = vpack.c.b16 %v194, %v192
    %v237 = vpack.c.b16 %v197, %v195
    %v238 = vpack.c.b16 %v198, %v196
    %v239 = vpack.c.b16 %v201, %v199
    %v240 = vpack.c.b16 %v202, %v200
    %v241 = vpack.c.b16 %v205, %v203
    %v242 = vpack.c.b16 %v206, %v204
    %v243 = vpack.c.b16 %v209, %v207
    %v244 = vpack.c.b16 %v210, %v208
    %v245 = vpack.c.b16 %v213, %v211
    %v246 = vpack.c.b16 %v214, %v212
    %279 = vmatprep.subr.bf16.mxu0 %v216
    %280 = vmatpush1.bf16.msra.mxu0 %v215
    %281 = vmatprep.subr.bf16.mxu0 %v218
    %282 = vmatpush1.bf16.msra.mxu0 %v217
    %283 = vmatprep.subr.bf16.mxu0 %v220
    %284 = vmatpush1.bf16.msra.mxu0 %v219
    %285 = vmatprep.subr.bf16.mxu0 %v222
    %286 = vmatpush1.bf16.msra.mxu0 %v221
    %287 = vmatprep.subr.bf16.mxu0 %v224
    %288 = vmatpush1.bf16.msra.mxu0 %v223
    %289 = vmatprep.subr.bf16.mxu0 %v226
    %290 = vmatpush1.bf16.msra.mxu0 %v225
    %291 = vmatprep.subr.bf16.mxu0 %v228
    %292 = vmatpush1.bf16.msra.mxu0 %v227
    %293 = vmatprep.subr.bf16.mxu0 %v230
    %294 = vmatpush1.bf16.msra.mxu0 %v229
    %295 = vmatprep.subr.bf16.mxu0 %v232
    %296 = vmatpush1.bf16.msra.mxu0 %v231
    %297 = vmatprep.subr.bf16.mxu0 %v234
    %298 = vmatpush1.bf16.msra.mxu0 %v233
    %299 = vmatprep.subr.bf16.mxu0 %v236
    %300 = vmatpush1.bf16.msra.mxu0 %v235
    %301 = vmatprep.subr.bf16.mxu0 %v238
    %302 = vmatpush1.bf16.msra.mxu0 %v237
    %303 = vmatprep.subr.bf16.mxu0 %v240
    %304 = vmatpush1.bf16.msra.mxu0 %v239
    %305 = vmatprep.subr.bf16.mxu0 %v242
    %306 = vmatpush1.bf16.msra.mxu0 %v241
    %307 = vmatprep.subr.bf16.mxu0 %v244
    %308 = vmatpush1.bf16.msra.mxu0 %v243
    %309 = vmatprep.subr.bf16.mxu0 %v246
    %310 = vmatpush1.bf16.msra.mxu0 %v245
    %311 = vmatprep.mubr.bf16.mxu0 %v104
    %312 = vmatmul.mubr.bf16.gmra.mrb[0].mxu0 %v103
    %v313 = vpop.f32.mrb[0].mxu0
    %v314 = vadd.f32 %v72, %v313
    %v315 = vpop.f32.mrb[0].mxu0
    %v316 = vadd.f32 %v76, %v315
    %v317 = vpop.f32.mrb[0].mxu0
    %v318 = vadd.f32 %v72, %v317
    %v319 = vpop.f32.mrb[0].mxu0
    %v320 = vadd.f32 %v76, %v319
    %321 = vmatprep.mubr.bf16.mxu0 %v106
    %322 = vmatmul.mubr.bf16.gmra.mrb[0].mxu0 %v105
    %v323 = vpop.f32.mrb[0].mxu0
    %v324 = vadd.f32 %v72, %v323
    %v325 = vpop.f32.mrb[0].mxu0
    %v326 = vadd.f32 %v76, %v325
    %v327 = vpop.f32.mrb[0].mxu0
    %v328 = vadd.f32 %v72, %v327
    %v329 = vpop.f32.mrb[0].mxu0
    %v330 = vadd.f32 %v76, %v329
    %331 = vmatprep.mubr.bf16.mxu0 %v108
    %332 = vmatmul.mubr.bf16.gmra.mrb[0].mxu0 %v107
    %v333 = vpop.f32.mrb[0].mxu0
    %v334 = vadd.f32 %v72, %v333
    %v335 = vpop.f32.mrb[0].mxu0
    %v336 = vadd.f32 %v76, %v335
    %v337 = vpop.f32.mrb[0].mxu0
    %v338 = vadd.f32 %v72, %v337
    %v339 = vpop.f32.mrb[0].mxu0
    %v340 = vadd.f32 %v76, %v339
    %341 = vmatprep.mubr.bf16.mxu0 %v110
    %342 = vmatmul.mubr.bf16.gmra.mrb[0].mxu0 %v109
    %v343 = vpop.f32.mrb[0].mxu0
    %v344 = vadd.f32 %v72, %v343
    %v345 = vpop.f32.mrb[0].mxu0
    %v346 = vadd.f32 %v76, %v345
    %v347 = vpop.f32.mrb[0].mxu0
    %v348 = vadd.f32 %v72, %v347
    %v349 = vpop.f32.mrb[0].mxu0
    %v350 = vadd.f32 %v76, %v349
    %351 = vdwg.mxu0
    %v352 = vmax.f32 %v314, 0.0
    %v353 = vmax.f32 %v316, 0.0
    %v354 = vmax.f32 %v318, 0.0
    %v355 = vmax.f32 %v320, 0.0
    %v356 = vmax.f32 %v324, 0.0
    %v357 = vmax.f32 %v326, 0.0
    %v358 = vmax.f32 %v328, 0.0
    %v359 = vmax.f32 %v330, 0.0
    %v360 = vmax.f32 %v334, 0.0
    %v361 = vmax.f32 %v336, 0.0
    %v362 = vmax.f32 %v338, 0.0
    %v363 = vmax.f32 %v340, 0.0
    %v364 = vmax.f32 %v344, 0.0
    %v365 = vmax.f32 %v346, 0.0
    %v366 = vmax.f32 %v348, 0.0
    %v367 = vmax.f32 %v350, 0.0
    %v368 = vadd.f32 %v352, %v354
    %v369 = vadd.f32 %v368, %v356
    %v370 = vadd.f32 %v369, %v358
    %v371 = vadd.f32 %v370, %v360
    %v372 = vadd.f32 %v371, %v362
    %v373 = vadd.f32 %v372, %v364
    %v374 = vadd.f32 %v373, %v366
    %v375 = vrot.slane %v374, 4
    %v376 = vadd.f32 %v374, %v375
    %v377 = vrot.slane %v376, 2
    %v378 = vadd.f32 %v376, %v377
    %v379 = vrot.slane %v378, 1
    %v380 = vadd.f32 %v378, %v379
    %v381 = vadd.f32 %v353, %v355
    %v382 = vadd.f32 %v381, %v357
    %v383 = vadd.f32 %v382, %v359
    %v384 = vadd.f32 %v383, %v361
    %v385 = vadd.f32 %v384, %v363
    %v386 = vadd.f32 %v385, %v365
    %v387 = vadd.f32 %v386, %v367
    %v388 = vrot.slane %v387, 4
    %v389 = vadd.f32 %v387, %v388
    %v390 = vrot.slane %v389, 2
    %v391 = vadd.f32 %v389, %v390
    %v392 = vrot.slane %v391, 1
    %v393 = vadd.f32 %v391, %v392
    %v394 = vadd.f32 %v380, 0.0
    %v395 = vadd.f32 %v393, 0.0
    %v396 = vmul.f32 %v394, 0.015625
    %v397 = vmul.f32 %v395, 0.015625
    %v398 = vxor.u32 %v396, 2147483648
    %v399 = vxor.u32 %v397, 2147483648
    %v400 = vmul.f32 %v398, 1.442695
    %v401 = vpow.pop %v400
    %v402 = vmul.f32 %v399, 1.442695
    %v403 = vpow.pop %v402
    %v404 = vadd.f32 %v401, 1.0
    %v405 = vadd.f32 %v403, 1.0
    %v406 = vrcp.pop %v404
    %v407 = vmul.f32 1.0, %v406
    %v408 = vrcp.pop %v405
    %v409 = vmul.f32 1.0, %v408
    %v410 = vadd.f32 %v407, 1.0
    %v411 = vadd.f32 %v409, 1.0
    %s412 = sadd.s32 %s57, 16
    %s413 = smul.addr %s412, 4
    %s414 = scalar_lea.vmem %s0, %s413
    %v415 = vld [vmem:[%s414] sm:$0xff]
    %v416 = vld [vmem:[%s414 + $0x8] sm:$0xff]
    %v417 = vld [vmem:[%s414 + $0x10] sm:$0xff]
    %v418 = vld [vmem:[%s414 + $0x18] sm:$0xff]
    %v419 = vld [vmem:[%s414 + $0x20] sm:$0xff]
    %v420 = vld [vmem:[%s414 + $0x28] sm:$0xff]
    %v421 = vld [vmem:[%s414 + $0x30] sm:$0xff]
    %v422 = vld [vmem:[%s414 + $0x38] sm:$0xff]
    %v431 = vunpack.c.l.b16 %v415
    %v432 = vunpack.c.h.b16 %v415
    %v433 = vunpack.c.l.b16 %v416
    %v434 = vunpack.c.h.b16 %v416
    %v435 = vunpack.c.l.b16 %v417
    %v436 = vunpack.c.h.b16 %v417
    %v437 = vunpack.c.l.b16 %v418
    %v438 = vunpack.c.h.b16 %v418
    %v439 = vunpack.c.l.b16 %v419
    %v440 = vunpack.c.h.b16 %v419
    %v441 = vunpack.c.l.b16 %v420
    %v442 = vunpack.c.h.b16 %v420
    %v443 = vunpack.c.l.b16 %v421
    %v444 = vunpack.c.h.b16 %v421
    %v445 = vunpack.c.l.b16 %v422
    %v446 = vunpack.c.h.b16 %v422
    %v447 = vpack.c.b16 %v433, %v431
    %v448 = vpack.c.b16 %v434, %v432
    %v449 = vpack.c.b16 %v437, %v435
    %v450 = vpack.c.b16 %v438, %v436
    %v451 = vpack.c.b16 %v441, %v439
    %v452 = vpack.c.b16 %v442, %v440
    %v453 = vpack.c.b16 %v445, %v443
    %v454 = vpack.c.b16 %v446, %v444
    %463 = vmatprep.subr.bf16.mxu0 %v216
    %464 = vmatpush1.bf16.msra.mxu0 %v215
    %465 = vmatprep.subr.bf16.mxu0 %v218
    %466 = vmatpush1.bf16.msra.mxu0 %v217
    %467 = vmatprep.subr.bf16.mxu0 %v220
    %468 = vmatpush1.bf16.msra.mxu0 %v219
    %469 = vmatprep.subr.bf16.mxu0 %v222
    %470 = vmatpush1.bf16.msra.mxu0 %v221
    %471 = vmatprep.subr.bf16.mxu0 %v224
    %472 = vmatpush1.bf16.msra.mxu0 %v223
    %473 = vmatprep.subr.bf16.mxu0 %v226
    %474 = vmatpush1.bf16.msra.mxu0 %v225
    %475 = vmatprep.subr.bf16.mxu0 %v228
    %476 = vmatpush1.bf16.msra.mxu0 %v227
    %477 = vmatprep.subr.bf16.mxu0 %v230
    %478 = vmatpush1.bf16.msra.mxu0 %v229
    %479 = vmatprep.subr.bf16.mxu0 %v232
    %480 = vmatpush1.bf16.msra.mxu0 %v231
    %481 = vmatprep.subr.bf16.mxu0 %v234
    %482 = vmatpush1.bf16.msra.mxu0 %v233
    %483 = vmatprep.subr.bf16.mxu0 %v236
    %484 = vmatpush1.bf16.msra.mxu0 %v235
    %485 = vmatprep.subr.bf16.mxu0 %v238
    %486 = vmatpush1.bf16.msra.mxu0 %v237
    %487 = vmatprep.subr.bf16.mxu0 %v240
    %488 = vmatpush1.bf16.msra.mxu0 %v239
    %489 = vmatprep.subr.bf16.mxu0 %v242
    %490 = vmatpush1.bf16.msra.mxu0 %v241
    %491 = vmatprep.subr.bf16.mxu0 %v244
    %492 = vmatpush1.bf16.msra.mxu0 %v243
    %493 = vmatprep.subr.bf16.mxu0 %v246
    %494 = vmatpush1.bf16.msra.mxu0 %v245
    %495 = vmatprep.mubr.bf16.mxu0 %v448
    %496 = vmatmul.mubr.bf16.gmra.mrb[0].mxu0 %v447
    %v497 = vpop.f32.mrb[0].mxu0
    %v498 = vadd.f32 %v72, %v497
    %v499 = vpop.f32.mrb[0].mxu0
    %v500 = vadd.f32 %v76, %v499
    %v501 = vpop.f32.mrb[0].mxu0
    %v502 = vadd.f32 %v72, %v501
    %v503 = vpop.f32.mrb[0].mxu0
    %v504 = vadd.f32 %v76, %v503
    %505 = vmatprep.mubr.bf16.mxu0 %v450
    %506 = vmatmul.mubr.bf16.gmra.mrb[0].mxu0 %v449
    %v507 = vpop.f32.mrb[0].mxu0
    %v508 = vadd.f32 %v72, %v507
    %v509 = vpop.f32.mrb[0].mxu0
    %v510 = vadd.f32 %v76, %v509
    %v511 = vpop.f32.mrb[0].mxu0
    %v512 = vadd.f32 %v72, %v511
    %v513 = vpop.f32.mrb[0].mxu0
    %v514 = vadd.f32 %v76, %v513
    %515 = vmatprep.mubr.bf16.mxu0 %v452
    %516 = vmatmul.mubr.bf16.gmra.mrb[0].mxu0 %v451
    %v517 = vpop.f32.mrb[0].mxu0
    %v518 = vadd.f32 %v72, %v517
    %v519 = vpop.f32.mrb[0].mxu0
    %v520 = vadd.f32 %v76, %v519
    %v521 = vpop.f32.mrb[0].mxu0
    %v522 = vadd.f32 %v72, %v521
    %v523 = vpop.f32.mrb[0].mxu0
    %v524 = vadd.f32 %v76, %v523
    %525 = vmatprep.mubr.bf16.mxu0 %v454
    %526 = vmatmul.mubr.bf16.gmra.mrb[0].mxu0 %v453
    %v527 = vpop.f32.mrb[0].mxu0
    %v528 = vadd.f32 %v72, %v527
    %v529 = vpop.f32.mrb[0].mxu0
    %v530 = vadd.f32 %v76, %v529
    %v531 = vpop.f32.mrb[0].mxu0
    %v532 = vadd.f32 %v72, %v531
    %v533 = vpop.f32.mrb[0].mxu0
    %v534 = vadd.f32 %v76, %v533
    %535 = vdwg.mxu0
    %v536 = vmax.f32 %v498, 0.0
    %v537 = vmax.f32 %v500, 0.0
    %v538 = vmax.f32 %v502, 0.0
    %v539 = vmax.f32 %v504, 0.0
    %v540 = vmax.f32 %v508, 0.0
    %v541 = vmax.f32 %v510, 0.0
    %v542 = vmax.f32 %v512, 0.0
    %v543 = vmax.f32 %v514, 0.0
    %v544 = vmax.f32 %v518, 0.0
    %v545 = vmax.f32 %v520, 0.0
    %v546 = vmax.f32 %v522, 0.0
    %v547 = vmax.f32 %v524, 0.0
    %v548 = vmax.f32 %v528, 0.0
    %v549 = vmax.f32 %v530, 0.0
    %v550 = vmax.f32 %v532, 0.0
    %v551 = vmax.f32 %v534, 0.0
    %v552 = vadd.f32 %v536, %v538
    %v553 = vadd.f32 %v552, %v540
    %v554 = vadd.f32 %v553, %v542
    %v555 = vadd.f32 %v554, %v544
    %v556 = vadd.f32 %v555, %v546
    %v557 = vadd.f32 %v556, %v548
    %v558 = vadd.f32 %v557, %v550
    %v559 = vrot.slane %v558, 4
    %v560 = vadd.f32 %v558, %v559
    %v561 = vrot.slane %v560, 2
    %v562 = vadd.f32 %v560, %v561
    %v563 = vrot.slane %v562, 1
    %v564 = vadd.f32 %v562, %v563
    %v565 = vadd.f32 %v537, %v539
    %v566 = vadd.f32 %v565, %v541
    %v567 = vadd.f32 %v566, %v543
    %v568 = vadd.f32 %v567, %v545
    %v569 = vadd.f32 %v568, %v547
    %v570 = vadd.f32 %v569, %v549
    %v571 = vadd.f32 %v570, %v551
    %v572 = vrot.slane %v571, 4
    %v573 = vadd.f32 %v571, %v572
    %v574 = vrot.slane %v573, 2
    %v575 = vadd.f32 %v573, %v574
    %v576 = vrot.slane %v575, 1
    %v577 = vadd.f32 %v575, %v576
    %v578 = vadd.f32 %v564, 0.0
    %v579 = vadd.f32 %v577, 0.0
    %v580 = vmul.f32 %v578, 0.015625
    %v581 = vmul.f32 %v579, 0.015625
    %v582 = vxor.u32 %v580, 2147483648
    %v583 = vxor.u32 %v581, 2147483648
    %v584 = vmul.f32 %v582, 1.442695
    %v585 = vpow.pop %v584
    %v586 = vmul.f32 %v583, 1.442695
    %v587 = vpow.pop %v586
    %v588 = vadd.f32 %v585, 1.0
    %v589 = vadd.f32 %v587, 1.0
    %v590 = vrcp.pop %v588
    %v591 = vmul.f32 1.0, %v590
    %v592 = vrcp.pop %v589
    %v593 = vmul.f32 1.0, %v592
    %v594 = vadd.f32 %v591, 1.0
    %v595 = vadd.f32 %v593, 1.0
    %s596 = scalar_lea.vmem %s4, 256
    %v597 = vld [vmem:[%s596] sm:$0xff]
    %v598 = vld [vmem:[%s596 + $0x8] sm:$0xff]
    %v599 = vld [vmem:[%s596 + $0x10] sm:$0xff]
    %v600 = vld [vmem:[%s596 + $0x18] sm:$0xff]
    %v601 = vld [vmem:[%s596 + $0x20] sm:$0xff]
    %v602 = vld [vmem:[%s596 + $0x28] sm:$0xff]
    %v603 = vld [vmem:[%s596 + $0x30] sm:$0xff]
    %v604 = vld [vmem:[%s596 + $0x38] sm:$0xff]
    %v605 = vld [vmem:[%s596 + $0x40] sm:$0xff]
    %v606 = vld [vmem:[%s596 + $0x48] sm:$0xff]
    %v607 = vld [vmem:[%s596 + $0x50] sm:$0xff]
    %v608 = vld [vmem:[%s596 + $0x58] sm:$0xff]
    %v609 = vld [vmem:[%s596 + $0x60] sm:$0xff]
    %v610 = vld [vmem:[%s596 + $0x68] sm:$0xff]
    %v611 = vld [vmem:[%s596 + $0x70] sm:$0xff]
    %v612 = vld [vmem:[%s596 + $0x78] sm:$0xff]
    %v613 = vld [vmem:[%s596 + $0x80] sm:$0xff]
    %v614 = vld [vmem:[%s596 + $0x88] sm:$0xff]
    %v615 = vld [vmem:[%s596 + $0x90] sm:$0xff]
    %v616 = vld [vmem:[%s596 + $0x98] sm:$0xff]
    %v617 = vld [vmem:[%s596 + $0xa0] sm:$0xff]
    %v618 = vld [vmem:[%s596 + $0xa8] sm:$0xff]
    %v619 = vld [vmem:[%s596 + $0xb0] sm:$0xff]
    %v620 = vld [vmem:[%s596 + $0xb8] sm:$0xff]
    %v621 = vld [vmem:[%s596 + $0xc0] sm:$0xff]
    %v622 = vld [vmem:[%s596 + $0xc8] sm:$0xff]
    %v623 = vld [vmem:[%s596 + $0xd0] sm:$0xff]
    %v624 = vld [vmem:[%s596 + $0xd8] sm:$0xff]
    %v625 = vld [vmem:[%s596 + $0xe0] sm:$0xff]
    %v626 = vld [vmem:[%s596 + $0xe8] sm:$0xff]
    %v627 = vld [vmem:[%s596 + $0xf0] sm:$0xff]
    %v628 = vld [vmem:[%s596 + $0xf8] sm:$0xff]
    %s629 = scalar_lea.vmem %s5, 1
    %v630 = vld [vmem:[%s629] ss:$4 sm:$0x3]
    %s631 = smul.addr %s57, 4
    %s632 = scalar_lea.vmem %s1, %s631
    %v633 = vld [vmem:[%s632] sm:$0xff]
    %v634 = vld [vmem:[%s632 + $0x8] sm:$0xff]
    %v635 = vld [vmem:[%s632 + $0x10] sm:$0xff]
    %v636 = vld [vmem:[%s632 + $0x18] sm:$0xff]
    %v637 = vld [vmem:[%s632 + $0x20] sm:$0xff]
    %v638 = vld [vmem:[%s632 + $0x28] sm:$0xff]
    %v639 = vld [vmem:[%s632 + $0x30] sm:$0xff]
    %v640 = vld [vmem:[%s632 + $0x38] sm:$0xff]
    %v642 = vlaneseq
    %v643 = vshrl.u32 %v642, 7
    %v644 = vsub.s32 0, %v643
    %v645 = vrot.slane %v630, %v644
    %v646 = vlaneseq
    %v647 = vshrl.u32 %v646, 7
    %v648 = vsub.s32 1, %v647
    %v649 = vrot.slane %v630, %v648
    %v660 = vunpack.c.l.b16 %v633
    %v661 = vunpack.c.h.b16 %v633
    %v662 = vunpack.c.l.b16 %v634
    %v663 = vunpack.c.h.b16 %v634
    %v664 = vunpack.c.l.b16 %v635
    %v665 = vunpack.c.h.b16 %v635
    %v666 = vunpack.c.l.b16 %v636
    %v667 = vunpack.c.h.b16 %v636
    %v668 = vunpack.c.l.b16 %v637
    %v669 = vunpack.c.h.b16 %v637
    %v670 = vunpack.c.l.b16 %v638
    %v671 = vunpack.c.h.b16 %v638
    %v672 = vunpack.c.l.b16 %v639
    %v673 = vunpack.c.h.b16 %v639
    %v674 = vunpack.c.l.b16 %v640
    %v675 = vunpack.c.h.b16 %v640
    %v676 = vpack.c.b16 %v662, %v660
    %v677 = vpack.c.b16 %v663, %v661
    %v678 = vpack.c.b16 %v666, %v664
    %v679 = vpack.c.b16 %v667, %v665
    %v680 = vpack.c.b16 %v670, %v668
    %v681 = vpack.c.b16 %v671, %v669
    %v682 = vpack.c.b16 %v674, %v672
    %v683 = vpack.c.b16 %v675, %v673
    %v724 = vunpack.c.l.b16 %v597
    %v725 = vunpack.c.h.b16 %v597
    %v726 = vunpack.c.l.b16 %v598
    %v727 = vunpack.c.h.b16 %v598
    %v728 = vunpack.c.l.b16 %v599
    %v729 = vunpack.c.h.b16 %v599
    %v730 = vunpack.c.l.b16 %v600
    %v731 = vunpack.c.h.b16 %v600
    %v732 = vunpack.c.l.b16 %v601
    %v733 = vunpack.c.h.b16 %v601
    %v734 = vunpack.c.l.b16 %v602
    %v735 = vunpack.c.h.b16 %v602
    %v736 = vunpack.c.l.b16 %v603
    %v737 = vunpack.c.h.b16 %v603
    %v738 = vunpack.c.l.b16 %v604
    %v739 = vunpack.c.h.b16 %v604
    %v740 = vunpack.c.l.b16 %v605
    %v741 = vunpack.c.h.b16 %v605
    %v742 = vunpack.c.l.b16 %v606
    %v743 = vunpack.c.h.b16 %v606
    %v744 = vunpack.c.l.b16 %v607
    %v745 = vunpack.c.h.b16 %v607
    %v746 = vunpack.c.l.b16 %v608
    %v747 = vunpack.c.h.b16 %v608
    %v748 = vunpack.c.l.b16 %v609
    %v749 = vunpack.c.h.b16 %v609
    %v750 = vunpack.c.l.b16 %v610
    %v751 = vunpack.c.h.b16 %v610
    %v752 = vunpack.c.l.b16 %v611
    %v753 = vunpack.c.h.b16 %v611
    %v754 = vunpack.c.l.b16 %v612
    %v755 = vunpack.c.h.b16 %v612
    %v756 = vunpack.c.l.b16 %v613
    %v757 = vunpack.c.h.b16 %v613
    %v758 = vunpack.c.l.b16 %v614
    %v759 = vunpack.c.h.b16 %v614
    %v760 = vunpack.c.l.b16 %v615
    %v761 = vunpack.c.h.b16 %v615
    %v762 = vunpack.c.l.b16 %v616
    %v763 = vunpack.c.h.b16 %v616
    %v764 = vunpack.c.l.b16 %v617
    %v765 = vunpack.c.h.b16 %v617
    %v766 = vunpack.c.l.b16 %v618
    %v767 = vunpack.c.h.b16 %v618
    %v768 = vunpack.c.l.b16 %v619
    %v769 = vunpack.c.h.b16 %v619
    %v770 = vunpack.c.l.b16 %v620
    %v771 = vunpack.c.h.b16 %v620
    %v772 = vunpack.c.l.b16 %v621
    %v773 = vunpack.c.h.b16 %v621
    %v774 = vunpack.c.l.b16 %v622
    %v775 = vunpack.c.h.b16 %v622
    %v776 = vunpack.c.l.b16 %v623
    %v777 = vunpack.c.h.b16 %v623
    %v778 = vunpack.c.l.b16 %v624
    %v779 = vunpack.c.h.b16 %v624
    %v780 = vunpack.c.l.b16 %v625
    %v781 = vunpack.c.h.b16 %v625
    %v782 = vunpack.c.l.b16 %v626
    %v783 = vunpack.c.h.b16 %v626
    %v784 = vunpack.c.l.b16 %v627
    %v785 = vunpack.c.h.b16 %v627
    %v786 = vunpack.c.l.b16 %v628
    %v787 = vunpack.c.h.b16 %v628
    %v788 = vpack.c.b16 %v726, %v724
    %v789 = vpack.c.b16 %v727, %v725
    %v790 = vpack.c.b16 %v730, %v728
    %v791 = vpack.c.b16 %v731, %v729
    %v792 = vpack.c.b16 %v734, %v732
    %v793 = vpack.c.b16 %v735, %v733
    %v794 = vpack.c.b16 %v738, %v736
    %v795 = vpack.c.b16 %v739, %v737
    %v796 = vpack.c.b16 %v742, %v740
    %v797 = vpack.c.b16 %v743, %v741
    %v798 = vpack.c.b16 %v746, %v744
    %v799 = vpack.c.b16 %v747, %v745
    %v800 = vpack.c.b16 %v750, %v748
    %v801 = vpack.c.b16 %v751, %v749
    %v802 = vpack.c.b16 %v754, %v752
    %v803 = vpack.c.b16 %v755, %v753
    %v804 = vpack.c.b16 %v758, %v756
    %v805 = vpack.c.b16 %v759, %v757
    %v806 = vpack.c.b16 %v762, %v760
    %v807 = vpack.c.b16 %v763, %v761
    %v808 = vpack.c.b16 %v766, %v764
    %v809 = vpack.c.b16 %v767, %v765
    %v810 = vpack.c.b16 %v770, %v768
    %v811 = vpack.c.b16 %v771, %v769
    %v812 = vpack.c.b16 %v774, %v772
    %v813 = vpack.c.b16 %v775, %v773
    %v814 = vpack.c.b16 %v778, %v776
    %v815 = vpack.c.b16 %v779, %v777
    %v816 = vpack.c.b16 %v782, %v780
    %v817 = vpack.c.b16 %v783, %v781
    %v818 = vpack.c.b16 %v786, %v784
    %v819 = vpack.c.b16 %v787, %v785
    %852 = vmatprep.subr.bf16.mxu0 %v789
    %853 = vmatpush1.bf16.msra.mxu0 %v788
    %854 = vmatprep.subr.bf16.mxu0 %v791
    %855 = vmatpush1.bf16.msra.mxu0 %v790
    %856 = vmatprep.subr.bf16.mxu0 %v793
    %857 = vmatpush1.bf16.msra.mxu0 %v792
    %858 = vmatprep.subr.bf16.mxu0 %v795
    %859 = vmatpush1.bf16.msra.mxu0 %v794
    %860 = vmatprep.subr.bf16.mxu0 %v797
    %861 = vmatpush1.bf16.msra.mxu0 %v796
    %862 = vmatprep.subr.bf16.mxu0 %v799
    %863 = vmatpush1.bf16.msra.mxu0 %v798
    %864 = vmatprep.subr.bf16.mxu0 %v801
    %865 = vmatpush1.bf16.msra.mxu0 %v800
    %866 = vmatprep.subr.bf16.mxu0 %v803
    %867 = vmatpush1.bf16.msra.mxu0 %v802
    %868 = vmatprep.subr.bf16.mxu0 %v805
    %869 = vmatpush1.bf16.msra.mxu0 %v804
    %870 = vmatprep.subr.bf16.mxu0 %v807
    %871 = vmatpush1.bf16.msra.mxu0 %v806
    %872 = vmatprep.subr.bf16.mxu0 %v809
    %873 = vmatpush1.bf16.msra.mxu0 %v808
    %874 = vmatprep.subr.bf16.mxu0 %v811
    %875 = vmatpush1.bf16.msra.mxu0 %v810
    %876 = vmatprep.subr.bf16.mxu0 %v813
    %877 = vmatpush1.bf16.msra.mxu0 %v812
    %878 = vmatprep.subr.bf16.mxu0 %v815
    %879 = vmatpush1.bf16.msra.mxu0 %v814
    %880 = vmatprep.subr.bf16.mxu0 %v817
    %881 = vmatpush1.bf16.msra.mxu0 %v816
    %882 = vmatprep.subr.bf16.mxu0 %v819
    %883 = vmatpush1.bf16.msra.mxu0 %v818
    %884 = vmatprep.mubr.bf16.mxu0 %v677
    %885 = vmatmul.mubr.bf16.gmra.mrb[0].mxu0 %v676
    %v886 = vpop.f32.mrb[0].mxu0
    %v887 = vadd.f32 %v645, %v886
    %v888 = vpop.f32.mrb[0].mxu0
    %v889 = vadd.f32 %v649, %v888
    %v890 = vpop.f32.mrb[0].mxu0
    %v891 = vadd.f32 %v645, %v890
    %v892 = vpop.f32.mrb[0].mxu0
    %v893 = vadd.f32 %v649, %v892
    %894 = vmatprep.mubr.bf16.mxu0 %v679
    %895 = vmatmul.mubr.bf16.gmra.mrb[0].mxu0 %v678
    %v896 = vpop.f32.mrb[0].mxu0
    %v897 = vadd.f32 %v645, %v896
    %v898 = vpop.f32.mrb[0].mxu0
    %v899 = vadd.f32 %v649, %v898
    %v900 = vpop.f32.mrb[0].mxu0
    %v901 = vadd.f32 %v645, %v900
    %v902 = vpop.f32.mrb[0].mxu0
    %v903 = vadd.f32 %v649, %v902
    %904 = vmatprep.mubr.bf16.mxu0 %v681
    %905 = vmatmul.mubr.bf16.gmra.mrb[0].mxu0 %v680
    %v906 = vpop.f32.mrb[0].mxu0
    %v907 = vadd.f32 %v645, %v906
    %v908 = vpop.f32.mrb[0].mxu0
    %v909 = vadd.f32 %v649, %v908
    %v910 = vpop.f32.mrb[0].mxu0
    %v911 = vadd.f32 %v645, %v910
    %v912 = vpop.f32.mrb[0].mxu0
    %v913 = vadd.f32 %v649, %v912
    %914 = vmatprep.mubr.bf16.mxu0 %v683
    %915 = vmatmul.mubr.bf16.gmra.mrb[0].mxu0 %v682
    %v916 = vpop.f32.mrb[0].mxu0
    %v917 = vadd.f32 %v645, %v916
    %v918 = vpop.f32.mrb[0].mxu0
    %v919 = vadd.f32 %v649, %v918
    %v920 = vpop.f32.mrb[0].mxu0
    %v921 = vadd.f32 %v645, %v920
    %v922 = vpop.f32.mrb[0].mxu0
    %v923 = vadd.f32 %v649, %v922
    %924 = vdwg.mxu0
    %v925 = vmax.f32 %v887, 0.0
    %v926 = vmax.f32 %v889, 0.0
    %v927 = vmax.f32 %v891, 0.0
    %v928 = vmax.f32 %v893, 0.0
    %v929 = vmax.f32 %v897, 0.0
    %v930 = vmax.f32 %v899, 0.0
    %v931 = vmax.f32 %v901, 0.0
    %v932 = vmax.f32 %v903, 0.0
    %v933 = vmax.f32 %v907, 0.0
    %v934 = vmax.f32 %v909, 0.0
    %v935 = vmax.f32 %v911, 0.0
    %v936 = vmax.f32 %v913, 0.0
    %v937 = vmax.f32 %v917, 0.0
    %v938 = vmax.f32 %v919, 0.0
    %v939 = vmax.f32 %v921, 0.0
    %v940 = vmax.f32 %v923, 0.0
    %v941 = vadd.f32 %v925, %v927
    %v942 = vadd.f32 %v941, %v929
    %v943 = vadd.f32 %v942, %v931
    %v944 = vadd.f32 %v943, %v933
    %v945 = vadd.f32 %v944, %v935
    %v946 = vadd.f32 %v945, %v937
    %v947 = vadd.f32 %v946, %v939
    %v948 = vrot.slane %v947, 4
    %v949 = vadd.f32 %v947, %v948
    %v950 = vrot.slane %v949, 2
    %v951 = vadd.f32 %v949, %v950
    %v952 = vrot.slane %v951, 1
    %v953 = vadd.f32 %v951, %v952
    %v954 = vadd.f32 %v926, %v928
    %v955 = vadd.f32 %v954, %v930
    %v956 = vadd.f32 %v955, %v932
    %v957 = vadd.f32 %v956, %v934
    %v958 = vadd.f32 %v957, %v936
    %v959 = vadd.f32 %v958, %v938
    %v960 = vadd.f32 %v959, %v940
    %v961 = vrot.slane %v960, 4
    %v962 = vadd.f32 %v960, %v961
    %v963 = vrot.slane %v962, 2
    %v964 = vadd.f32 %v962, %v963
    %v965 = vrot.slane %v964, 1
    %v966 = vadd.f32 %v964, %v965
    %v967 = vadd.f32 %v953, 0.0
    %v968 = vadd.f32 %v966, 0.0
    %v969 = vmul.f32 %v967, 0.015625
    %v970 = vmul.f32 %v968, 0.015625
    %v971 = vxor.u32 %v969, 2147483648
    %v972 = vxor.u32 %v970, 2147483648
    %v973 = vmul.f32 %v971, 1.442695
    %v974 = vpow.pop %v973
    %v975 = vmul.f32 %v972, 1.442695
    %v976 = vpow.pop %v975
    %v977 = vadd.f32 %v974, 1.0
    %v978 = vadd.f32 %v976, 1.0
    %v979 = vrcp.pop %v977
    %v980 = vmul.f32 1.0, %v979
    %v981 = vrcp.pop %v978
    %v982 = vmul.f32 1.0, %v981
    %v983 = vadd.f32 %v980, 1.0
    %v984 = vadd.f32 %v982, 1.0
    %s985 = smul.addr %s412, 4
    %s986 = scalar_lea.vmem %s1, %s985
    %v987 = vld [vmem:[%s986] sm:$0xff]
    %v988 = vld [vmem:[%s986 + $0x8] sm:$0xff]
    %v989 = vld [vmem:[%s986 + $0x10] sm:$0xff]
    %v990 = vld [vmem:[%s986 + $0x18] sm:$0xff]
    %v991 = vld [vmem:[%s986 + $0x20] sm:$0xff]
    %v992 = vld [vmem:[%s986 + $0x28] sm:$0xff]
    %v993 = vld [vmem:[%s986 + $0x30] sm:$0xff]
    %v994 = vld [vmem:[%s986 + $0x38] sm:$0xff]
    %v1003 = vunpack.c.l.b16 %v987
    %v1004 = vunpack.c.h.b16 %v987
    %v1005 = vunpack.c.l.b16 %v988
    %v1006 = vunpack.c.h.b16 %v988
    %v1007 = vunpack.c.l.b16 %v989
    %v1008 = vunpack.c.h.b16 %v989
    %v1009 = vunpack.c.l.b16 %v990
    %v1010 = vunpack.c.h.b16 %v990
    %v1011 = vunpack.c.l.b16 %v991
    %v1012 = vunpack.c.h.b16 %v991
    %v1013 = vunpack.c.l.b16 %v992
    %v1014 = vunpack.c.h.b16 %v992
    %v1015 = vunpack.c.l.b16 %v993
    %v1016 = vunpack.c.h.b16 %v993
    %v1017 = vunpack.c.l.b16 %v994
    %v1018 = vunpack.c.h.b16 %v994
    %v1019 = vpack.c.b16 %v1005, %v1003
    %v1020 = vpack.c.b16 %v1006, %v1004
    %v1021 = vpack.c.b16 %v1009, %v1007
    %v1022 = vpack.c.b16 %v1010, %v1008
    %v1023 = vpack.c.b16 %v1013, %v1011
    %v1024 = vpack.c.b16 %v1014, %v1012
    %v1025 = vpack.c.b16 %v1017, %v1015
    %v1026 = vpack.c.b16 %v1018, %v1016
    %1035 = vmatprep.subr.bf16.mxu0 %v789
    %1036 = vmatpush1.bf16.msra.mxu0 %v788
    %1037 = vmatprep.subr.bf16.mxu0 %v791
    %1038 = vmatpush1.bf16.msra.mxu0 %v790
    %1039 = vmatprep.subr.bf16.mxu0 %v793
    %1040 = vmatpush1.bf16.msra.mxu0 %v792
    %1041 = vmatprep.subr.bf16.mxu0 %v795
    %1042 = vmatpush1.bf16.msra.mxu0 %v794
    %1043 = vmatprep.subr.bf16.mxu0 %v797
    %1044 = vmatpush1.bf16.msra.mxu0 %v796
    %1045 = vmatprep.subr.bf16.mxu0 %v799
    %1046 = vmatpush1.bf16.msra.mxu0 %v798
    %1047 = vmatprep.subr.bf16.mxu0 %v801
    %1048 = vmatpush1.bf16.msra.mxu0 %v800
    %1049 = vmatprep.subr.bf16.mxu0 %v803
    %1050 = vmatpush1.bf16.msra.mxu0 %v802
    %1051 = vmatprep.subr.bf16.mxu0 %v805
    %1052 = vmatpush1.bf16.msra.mxu0 %v804
    %1053 = vmatprep.subr.bf16.mxu0 %v807
    %1054 = vmatpush1.bf16.msra.mxu0 %v806
    %1055 = vmatprep.subr.bf16.mxu0 %v809
    %1056 = vmatpush1.bf16.msra.mxu0 %v808
    %1057 = vmatprep.subr.bf16.mxu0 %v811
    %1058 = vmatpush1.bf16.msra.mxu0 %v810
    %1059 = vmatprep.subr.bf16.mxu0 %v813
    %1060 = vmatpush1.bf16.msra.mxu0 %v812
    %1061 = vmatprep.subr.bf16.mxu0 %v815
    %1062 = vmatpush1.bf16.msra.mxu0 %v814
    %1063 = vmatprep.subr.bf16.mxu0 %v817
    %1064 = vmatpush1.bf16.msra.mxu0 %v816
    %1065 = vmatprep.subr.bf16.mxu0 %v819
    %1066 = vmatpush1.bf16.msra.mxu0 %v818
    %1067 = vmatprep.mubr.bf16.mxu0 %v1020
    %1068 = vmatmul.mubr.bf16.gmra.mrb[0].mxu0 %v1019
    %v1069 = vpop.f32.mrb[0].mxu0
    %v1070 = vadd.f32 %v645, %v1069
    %v1071 = vpop.f32.mrb[0].mxu0
    %v1072 = vadd.f32 %v649, %v1071
    %v1073 = vpop.f32.mrb[0].mxu0
    %v1074 = vadd.f32 %v645, %v1073
    %v1075 = vpop.f32.mrb[0].mxu0
    %v1076 = vadd.f32 %v649, %v1075
    %1077 = vmatprep.mubr.bf16.mxu0 %v1022
    %1078 = vmatmul.mubr.bf16.gmra.mrb[0].mxu0 %v1021
    %v1079 = vpop.f32.mrb[0].mxu0
    %v1080 = vadd.f32 %v645, %v1079
    %v1081 = vpop.f32.mrb[0].mxu0
    %v1082 = vadd.f32 %v649, %v1081
    %v1083 = vpop.f32.mrb[0].mxu0
    %v1084 = vadd.f32 %v645, %v1083
    %v1085 = vpop.f32.mrb[0].mxu0
    %v1086 = vadd.f32 %v649, %v1085
    %1087 = vmatprep.mubr.bf16.mxu0 %v1024
    %1088 = vmatmul.mubr.bf16.gmra.mrb[0].mxu0 %v1023
    %v1089 = vpop.f32.mrb[0].mxu0
    %v1090 = vadd.f32 %v645, %v1089
    %v1091 = vpop.f32.mrb[0].mxu0
    %v1092 = vadd.f32 %v649, %v1091
    %v1093 = vpop.f32.mrb[0].mxu0
    %v1094 = vadd.f32 %v645, %v1093
    %v1095 = vpop.f32.mrb[0].mxu0
    %v1096 = vadd.f32 %v649, %v1095
    %1097 = vmatprep.mubr.bf16.mxu0 %v1026
    %1098 = vmatmul.mubr.bf16.gmra.mrb[0].mxu0 %v1025
    %v1099 = vpop.f32.mrb[0].mxu0
    %v1100 = vadd.f32 %v645, %v1099
    %v1101 = vpop.f32.mrb[0].mxu0
    %v1102 = vadd.f32 %v649, %v1101
    %v1103 = vpop.f32.mrb[0].mxu0
    %v1104 = vadd.f32 %v645, %v1103
    %v1105 = vpop.f32.mrb[0].mxu0
    %v1106 = vadd.f32 %v649, %v1105
    %1107 = vdwg.mxu0
    %v1108 = vmax.f32 %v1070, 0.0
    %v1109 = vmax.f32 %v1072, 0.0
    %v1110 = vmax.f32 %v1074, 0.0
    %v1111 = vmax.f32 %v1076, 0.0
    %v1112 = vmax.f32 %v1080, 0.0
    %v1113 = vmax.f32 %v1082, 0.0
    %v1114 = vmax.f32 %v1084, 0.0
    %v1115 = vmax.f32 %v1086, 0.0
    %v1116 = vmax.f32 %v1090, 0.0
    %v1117 = vmax.f32 %v1092, 0.0
    %v1118 = vmax.f32 %v1094, 0.0
    %v1119 = vmax.f32 %v1096, 0.0
    %v1120 = vmax.f32 %v1100, 0.0
    %v1121 = vmax.f32 %v1102, 0.0
    %v1122 = vmax.f32 %v1104, 0.0
    %v1123 = vmax.f32 %v1106, 0.0
    %v1124 = vadd.f32 %v1108, %v1110
    %v1125 = vadd.f32 %v1124, %v1112
    %v1126 = vadd.f32 %v1125, %v1114
    %v1127 = vadd.f32 %v1126, %v1116
    %v1128 = vadd.f32 %v1127, %v1118
    %v1129 = vadd.f32 %v1128, %v1120
    %v1130 = vadd.f32 %v1129, %v1122
    %v1131 = vrot.slane %v1130, 4
    %v1132 = vadd.f32 %v1130, %v1131
    %v1133 = vrot.slane %v1132, 2
    %v1134 = vadd.f32 %v1132, %v1133
    %v1135 = vrot.slane %v1134, 1
    %v1136 = vadd.f32 %v1134, %v1135
    %v1137 = vadd.f32 %v1109, %v1111
    %v1138 = vadd.f32 %v1137, %v1113
    %v1139 = vadd.f32 %v1138, %v1115
    %v1140 = vadd.f32 %v1139, %v1117
    %v1141 = vadd.f32 %v1140, %v1119
    %v1142 = vadd.f32 %v1141, %v1121
    %v1143 = vadd.f32 %v1142, %v1123
    %v1144 = vrot.slane %v1143, 4
    %v1145 = vadd.f32 %v1143, %v1144
    %v1146 = vrot.slane %v1145, 2
    %v1147 = vadd.f32 %v1145, %v1146
    %v1148 = vrot.slane %v1147, 1
    %v1149 = vadd.f32 %v1147, %v1148
    %v1150 = vadd.f32 %v1136, 0.0
    %v1151 = vadd.f32 %v1149, 0.0
    %v1152 = vmul.f32 %v1150, 0.015625
    %v1153 = vmul.f32 %v1151, 0.015625
    %v1154 = vxor.u32 %v1152, 2147483648
    %v1155 = vxor.u32 %v1153, 2147483648
    %v1156 = vmul.f32 %v1154, 1.442695
    %v1157 = vpow.pop %v1156
    %v1158 = vmul.f32 %v1155, 1.442695
    %v1159 = vpow.pop %v1158
    %v1160 = vadd.f32 %v1157, 1.0
    %v1161 = vadd.f32 %v1159, 1.0
    %v1162 = vrcp.pop %v1160
    %v1163 = vmul.f32 1.0, %v1162
    %v1164 = vrcp.pop %v1161
    %v1165 = vmul.f32 1.0, %v1164
    %v1166 = vadd.f32 %v1163, 1.0
    %v1167 = vadd.f32 %v1165, 1.0
    %s1168 = scalar_lea.vmem %s4, 512
    %v1169 = vld [vmem:[%s1168] sm:$0xff]
    %v1170 = vld [vmem:[%s1168 + $0x8] sm:$0xff]
    %v1171 = vld [vmem:[%s1168 + $0x10] sm:$0xff]
    %v1172 = vld [vmem:[%s1168 + $0x18] sm:$0xff]
    %v1173 = vld [vmem:[%s1168 + $0x20] sm:$0xff]
    %v1174 = vld [vmem:[%s1168 + $0x28] sm:$0xff]
    %v1175 = vld [vmem:[%s1168 + $0x30] sm:$0xff]
    %v1176 = vld [vmem:[%s1168 + $0x38] sm:$0xff]
    %v1177 = vld [vmem:[%s1168 + $0x40] sm:$0xff]
    %v1178 = vld [vmem:[%s1168 + $0x48] sm:$0xff]
    %v1179 = vld [vmem:[%s1168 + $0x50] sm:$0xff]
    %v1180 = vld [vmem:[%s1168 + $0x58] sm:$0xff]
    %v1181 = vld [vmem:[%s1168 + $0x60] sm:$0xff]
    %v1182 = vld [vmem:[%s1168 + $0x68] sm:$0xff]
    %v1183 = vld [vmem:[%s1168 + $0x70] sm:$0xff]
    %v1184 = vld [vmem:[%s1168 + $0x78] sm:$0xff]
    %v1185 = vld [vmem:[%s1168 + $0x80] sm:$0xff]
    %v1186 = vld [vmem:[%s1168 + $0x88] sm:$0xff]
    %v1187 = vld [vmem:[%s1168 + $0x90] sm:$0xff]
    %v1188 = vld [vmem:[%s1168 + $0x98] sm:$0xff]
    %v1189 = vld [vmem:[%s1168 + $0xa0] sm:$0xff]
    %v1190 = vld [vmem:[%s1168 + $0xa8] sm:$0xff]
    %v1191 = vld [vmem:[%s1168 + $0xb0] sm:$0xff]
    %v1192 = vld [vmem:[%s1168 + $0xb8] sm:$0xff]
    %v1193 = vld [vmem:[%s1168 + $0xc0] sm:$0xff]
    %v1194 = vld [vmem:[%s1168 + $0xc8] sm:$0xff]
    %v1195 = vld [vmem:[%s1168 + $0xd0] sm:$0xff]
    %v1196 = vld [vmem:[%s1168 + $0xd8] sm:$0xff]
    %v1197 = vld [vmem:[%s1168 + $0xe0] sm:$0xff]
    %v1198 = vld [vmem:[%s1168 + $0xe8] sm:$0xff]
    %v1199 = vld [vmem:[%s1168 + $0xf0] sm:$0xff]
    %v1200 = vld [vmem:[%s1168 + $0xf8] sm:$0xff]
    %s1201 = scalar_lea.vmem %s5, 2
    %v1202 = vld [vmem:[%s1201] ss:$4 sm:$0x3]
    %s1203 = smul.addr %s57, 4
    %s1204 = scalar_lea.vmem %s2, %s1203
    %v1205 = vld [vmem:[%s1204] sm:$0xff]
    %v1206 = vld [vmem:[%s1204 + $0x8] sm:$0xff]
    %v1207 = vld [vmem:[%s1204 + $0x10] sm:$0xff]
    %v1208 = vld [vmem:[%s1204 + $0x18] sm:$0xff]
    %v1209 = vld [vmem:[%s1204 + $0x20] sm:$0xff]
    %v1210 = vld [vmem:[%s1204 + $0x28] sm:$0xff]
    %v1211 = vld [vmem:[%s1204 + $0x30] sm:$0xff]
    %v1212 = vld [vmem:[%s1204 + $0x38] sm:$0xff]
    %v1214 = vlaneseq
    %v1215 = vshrl.u32 %v1214, 7
    %v1216 = vsub.s32 0, %v1215
    %v1217 = vrot.slane %v1202, %v1216
    %v1218 = vlaneseq
    %v1219 = vshrl.u32 %v1218, 7
    %v1220 = vsub.s32 1, %v1219
    %v1221 = vrot.slane %v1202, %v1220
    %v1232 = vunpack.c.l.b16 %v1205
    %v1233 = vunpack.c.h.b16 %v1205
    %v1234 = vunpack.c.l.b16 %v1206
    %v1235 = vunpack.c.h.b16 %v1206
    %v1236 = vunpack.c.l.b16 %v1207
    %v1237 = vunpack.c.h.b16 %v1207
    %v1238 = vunpack.c.l.b16 %v1208
    %v1239 = vunpack.c.h.b16 %v1208
    %v1240 = vunpack.c.l.b16 %v1209
    %v1241 = vunpack.c.h.b16 %v1209
    %v1242 = vunpack.c.l.b16 %v1210
    %v1243 = vunpack.c.h.b16 %v1210
    %v1244 = vunpack.c.l.b16 %v1211
    %v1245 = vunpack.c.h.b16 %v1211
    %v1246 = vunpack.c.l.b16 %v1212
    %v1247 = vunpack.c.h.b16 %v1212
    %v1248 = vpack.c.b16 %v1234, %v1232
    %v1249 = vpack.c.b16 %v1235, %v1233
    %v1250 = vpack.c.b16 %v1238, %v1236
    %v1251 = vpack.c.b16 %v1239, %v1237
    %v1252 = vpack.c.b16 %v1242, %v1240
    %v1253 = vpack.c.b16 %v1243, %v1241
    %v1254 = vpack.c.b16 %v1246, %v1244
    %v1255 = vpack.c.b16 %v1247, %v1245
    %v1296 = vunpack.c.l.b16 %v1169
    %v1297 = vunpack.c.h.b16 %v1169
    %v1298 = vunpack.c.l.b16 %v1170
    %v1299 = vunpack.c.h.b16 %v1170
    %v1300 = vunpack.c.l.b16 %v1171
    %v1301 = vunpack.c.h.b16 %v1171
    %v1302 = vunpack.c.l.b16 %v1172
    %v1303 = vunpack.c.h.b16 %v1172
    %v1304 = vunpack.c.l.b16 %v1173
    %v1305 = vunpack.c.h.b16 %v1173
    %v1306 = vunpack.c.l.b16 %v1174
    %v1307 = vunpack.c.h.b16 %v1174
    %v1308 = vunpack.c.l.b16 %v1175
    %v1309 = vunpack.c.h.b16 %v1175
    %v1310 = vunpack.c.l.b16 %v1176
    %v1311 = vunpack.c.h.b16 %v1176
    %v1312 = vunpack.c.l.b16 %v1177
    %v1313 = vunpack.c.h.b16 %v1177
    %v1314 = vunpack.c.l.b16 %v1178
    %v1315 = vunpack.c.h.b16 %v1178
    %v1316 = vunpack.c.l.b16 %v1179
    %v1317 = vunpack.c.h.b16 %v1179
    %v1318 = vunpack.c.l.b16 %v1180
    %v1319 = vunpack.c.h.b16 %v1180
    %v1320 = vunpack.c.l.b16 %v1181
    %v1321 = vunpack.c.h.b16 %v1181
    %v1322 = vunpack.c.l.b16 %v1182
    %v1323 = vunpack.c.h.b16 %v1182
    %v1324 = vunpack.c.l.b16 %v1183
    %v1325 = vunpack.c.h.b16 %v1183
    %v1326 = vunpack.c.l.b16 %v1184
    %v1327 = vunpack.c.h.b16 %v1184
    %v1328 = vunpack.c.l.b16 %v1185
    %v1329 = vunpack.c.h.b16 %v1185
    %v1330 = vunpack.c.l.b16 %v1186
    %v1331 = vunpack.c.h.b16 %v1186
    %v1332 = vunpack.c.l.b16 %v1187
    %v1333 = vunpack.c.h.b16 %v1187
    %v1334 = vunpack.c.l.b16 %v1188
    %v1335 = vunpack.c.h.b16 %v1188
    %v1336 = vunpack.c.l.b16 %v1189
    %v1337 = vunpack.c.h.b16 %v1189
    %v1338 = vunpack.c.l.b16 %v1190
    %v1339 = vunpack.c.h.b16 %v1190
    %v1340 = vunpack.c.l.b16 %v1191
    %v1341 = vunpack.c.h.b16 %v1191
    %v1342 = vunpack.c.l.b16 %v1192
    %v1343 = vunpack.c.h.b16 %v1192
    %v1344 = vunpack.c.l.b16 %v1193
    %v1345 = vunpack.c.h.b16 %v1193
    %v1346 = vunpack.c.l.b16 %v1194
    %v1347 = vunpack.c.h.b16 %v1194
    %v1348 = vunpack.c.l.b16 %v1195
    %v1349 = vunpack.c.h.b16 %v1195
    %v1350 = vunpack.c.l.b16 %v1196
    %v1351 = vunpack.c.h.b16 %v1196
    %v1352 = vunpack.c.l.b16 %v1197
    %v1353 = vunpack.c.h.b16 %v1197
    %v1354 = vunpack.c.l.b16 %v1198
    %v1355 = vunpack.c.h.b16 %v1198
    %v1356 = vunpack.c.l.b16 %v1199
    %v1357 = vunpack.c.h.b16 %v1199
    %v1358 = vunpack.c.l.b16 %v1200
    %v1359 = vunpack.c.h.b16 %v1200
    %v1360 = vpack.c.b16 %v1298, %v1296
    %v1361 = vpack.c.b16 %v1299, %v1297
    %v1362 = vpack.c.b16 %v1302, %v1300
    %v1363 = vpack.c.b16 %v1303, %v1301
    %v1364 = vpack.c.b16 %v1306, %v1304
    %v1365 = vpack.c.b16 %v1307, %v1305
    %v1366 = vpack.c.b16 %v1310, %v1308
    %v1367 = vpack.c.b16 %v1311, %v1309
    %v1368 = vpack.c.b16 %v1314, %v1312
    %v1369 = vpack.c.b16 %v1315, %v1313
    %v1370 = vpack.c.b16 %v1318, %v1316
    %v1371 = vpack.c.b16 %v1319, %v1317
    %v1372 = vpack.c.b16 %v1322, %v1320
    %v1373 = vpack.c.b16 %v1323, %v1321
    %v1374 = vpack.c.b16 %v1326, %v1324
    %v1375 = vpack.c.b16 %v1327, %v1325
    %v1376 = vpack.c.b16 %v1330, %v1328
    %v1377 = vpack.c.b16 %v1331, %v1329
    %v1378 = vpack.c.b16 %v1334, %v1332
    %v1379 = vpack.c.b16 %v1335, %v1333
    %v1380 = vpack.c.b16 %v1338, %v1336
    %v1381 = vpack.c.b16 %v1339, %v1337
    %v1382 = vpack.c.b16 %v1342, %v1340
    %v1383 = vpack.c.b16 %v1343, %v1341
    %v1384 = vpack.c.b16 %v1346, %v1344
    %v1385 = vpack.c.b16 %v1347, %v1345
    %v1386 = vpack.c.b16 %v1350, %v1348
    %v1387 = vpack.c.b16 %v1351, %v1349
    %v1388 = vpack.c.b16 %v1354, %v1352
    %v1389 = vpack.c.b16 %v1355, %v1353
    %v1390 = vpack.c.b16 %v1358, %v1356
    %v1391 = vpack.c.b16 %v1359, %v1357
    %1424 = vmatprep.subr.bf16.mxu0 %v1361
    %1425 = vmatpush1.bf16.msra.mxu0 %v1360
    %1426 = vmatprep.subr.bf16.mxu0 %v1363
    %1427 = vmatpush1.bf16.msra.mxu0 %v1362
    %1428 = vmatprep.subr.bf16.mxu0 %v1365
    %1429 = vmatpush1.bf16.msra.mxu0 %v1364
    %1430 = vmatprep.subr.bf16.mxu0 %v1367
    %1431 = vmatpush1.bf16.msra.mxu0 %v1366
    %1432 = vmatprep.subr.bf16.mxu0 %v1369
    %1433 = vmatpush1.bf16.msra.mxu0 %v1368
    %1434 = vmatprep.subr.bf16.mxu0 %v1371
    %1435 = vmatpush1.bf16.msra.mxu0 %v1370
    %1436 = vmatprep.subr.bf16.mxu0 %v1373
    %1437 = vmatpush1.bf16.msra.mxu0 %v1372
    %1438 = vmatprep.subr.bf16.mxu0 %v1375
    %1439 = vmatpush1.bf16.msra.mxu0 %v1374
    %1440 = vmatprep.subr.bf16.mxu0 %v1377
    %1441 = vmatpush1.bf16.msra.mxu0 %v1376
    %1442 = vmatprep.subr.bf16.mxu0 %v1379
    %1443 = vmatpush1.bf16.msra.mxu0 %v1378
    %1444 = vmatprep.subr.bf16.mxu0 %v1381
    %1445 = vmatpush1.bf16.msra.mxu0 %v1380
    %1446 = vmatprep.subr.bf16.mxu0 %v1383
    %1447 = vmatpush1.bf16.msra.mxu0 %v1382
    %1448 = vmatprep.subr.bf16.mxu0 %v1385
    %1449 = vmatpush1.bf16.msra.mxu0 %v1384
    %1450 = vmatprep.subr.bf16.mxu0 %v1387
    %1451 = vmatpush1.bf16.msra.mxu0 %v1386
    %1452 = vmatprep.subr.bf16.mxu0 %v1389
    %1453 = vmatpush1.bf16.msra.mxu0 %v1388
    %1454 = vmatprep.subr.bf16.mxu0 %v1391
    %1455 = vmatpush1.bf16.msra.mxu0 %v1390
    %1456 = vmatprep.mubr.bf16.mxu0 %v1249
    %1457 = vmatmul.mubr.bf16.gmra.mrb[0].mxu0 %v1248
    %v1458 = vpop.f32.mrb[0].mxu0
    %v1459 = vadd.f32 %v1217, %v1458
    %v1460 = vpop.f32.mrb[0].mxu0
    %v1461 = vadd.f32 %v1221, %v1460
    %v1462 = vpop.f32.mrb[0].mxu0
    %v1463 = vadd.f32 %v1217, %v1462
    %v1464 = vpop.f32.mrb[0].mxu0
    %v1465 = vadd.f32 %v1221, %v1464
    %1466 = vmatprep.mubr.bf16.mxu0 %v1251
    %1467 = vmatmul.mubr.bf16.gmra.mrb[0].mxu0 %v1250
    %v1468 = vpop.f32.mrb[0].mxu0
    %v1469 = vadd.f32 %v1217, %v1468
    %v1470 = vpop.f32.mrb[0].mxu0
    %v1471 = vadd.f32 %v1221, %v1470
    %v1472 = vpop.f32.mrb[0].mxu0
    %v1473 = vadd.f32 %v1217, %v1472
    %v1474 = vpop.f32.mrb[0].mxu0
    %v1475 = vadd.f32 %v1221, %v1474
    %1476 = vmatprep.mubr.bf16.mxu0 %v1253
    %1477 = vmatmul.mubr.bf16.gmra.mrb[0].mxu0 %v1252
    %v1478 = vpop.f32.mrb[0].mxu0
    %v1479 = vadd.f32 %v1217, %v1478
    %v1480 = vpop.f32.mrb[0].mxu0
    %v1481 = vadd.f32 %v1221, %v1480
    %v1482 = vpop.f32.mrb[0].mxu0
    %v1483 = vadd.f32 %v1217, %v1482
    %v1484 = vpop.f32.mrb[0].mxu0
    %v1485 = vadd.f32 %v1221, %v1484
    %1486 = vmatprep.mubr.bf16.mxu0 %v1255
    %1487 = vmatmul.mubr.bf16.gmra.mrb[0].mxu0 %v1254
    %v1488 = vpop.f32.mrb[0].mxu0
    %v1489 = vadd.f32 %v1217, %v1488
    %v1490 = vpop.f32.mrb[0].mxu0
    %v1491 = vadd.f32 %v1221, %v1490
    %v1492 = vpop.f32.mrb[0].mxu0
    %v1493 = vadd.f32 %v1217, %v1492
    %v1494 = vpop.f32.mrb[0].mxu0
    %v1495 = vadd.f32 %v1221, %v1494
    %1496 = vdwg.mxu0
    %v1497 = vmax.f32 %v1459, 0.0
    %v1498 = vmax.f32 %v1461, 0.0
    %v1499 = vmax.f32 %v1463, 0.0
    %v1500 = vmax.f32 %v1465, 0.0
    %v1501 = vmax.f32 %v1469, 0.0
    %v1502 = vmax.f32 %v1471, 0.0
    %v1503 = vmax.f32 %v1473, 0.0
    %v1504 = vmax.f32 %v1475, 0.0
    %v1505 = vmax.f32 %v1479, 0.0
    %v1506 = vmax.f32 %v1481, 0.0
    %v1507 = vmax.f32 %v1483, 0.0
    %v1508 = vmax.f32 %v1485, 0.0
    %v1509 = vmax.f32 %v1489, 0.0
    %v1510 = vmax.f32 %v1491, 0.0
    %v1511 = vmax.f32 %v1493, 0.0
    %v1512 = vmax.f32 %v1495, 0.0
    %v1513 = vadd.f32 %v1497, %v1499
    %v1514 = vadd.f32 %v1513, %v1501
    %v1515 = vadd.f32 %v1514, %v1503
    %v1516 = vadd.f32 %v1515, %v1505
    %v1517 = vadd.f32 %v1516, %v1507
    %v1518 = vadd.f32 %v1517, %v1509
    %v1519 = vadd.f32 %v1518, %v1511
    %v1520 = vrot.slane %v1519, 4
    %v1521 = vadd.f32 %v1519, %v1520
    %v1522 = vrot.slane %v1521, 2
    %v1523 = vadd.f32 %v1521, %v1522
    %v1524 = vrot.slane %v1523, 1
    %v1525 = vadd.f32 %v1523, %v1524
    %v1526 = vadd.f32 %v1498, %v1500
    %v1527 = vadd.f32 %v1526, %v1502
    %v1528 = vadd.f32 %v1527, %v1504
    %v1529 = vadd.f32 %v1528, %v1506
    %v1530 = vadd.f32 %v1529, %v1508
    %v1531 = vadd.f32 %v1530, %v1510
    %v1532 = vadd.f32 %v1531, %v1512
    %v1533 = vrot.slane %v1532, 4
    %v1534 = vadd.f32 %v1532, %v1533
    %v1535 = vrot.slane %v1534, 2
    %v1536 = vadd.f32 %v1534, %v1535
    %v1537 = vrot.slane %v1536, 1
    %v1538 = vadd.f32 %v1536, %v1537
    %v1539 = vadd.f32 %v1525, 0.0
    %v1540 = vadd.f32 %v1538, 0.0
    %v1541 = vmul.f32 %v1539, 0.015625
    %v1542 = vmul.f32 %v1540, 0.015625
    %v1543 = vxor.u32 %v1541, 2147483648
    %v1544 = vxor.u32 %v1542, 2147483648
    %v1545 = vmul.f32 %v1543, 1.442695
    %v1546 = vpow.pop %v1545
    %v1547 = vmul.f32 %v1544, 1.442695
    %v1548 = vpow.pop %v1547
    %v1549 = vadd.f32 %v1546, 1.0
    %v1550 = vadd.f32 %v1548, 1.0
    %v1551 = vrcp.pop %v1549
    %v1552 = vmul.f32 1.0, %v1551
    %v1553 = vrcp.pop %v1550
    %v1554 = vmul.f32 1.0, %v1553
    %v1555 = vadd.f32 %v1552, 1.0
    %v1556 = vadd.f32 %v1554, 1.0
    %s1557 = smul.addr %s412, 4
    %s1558 = scalar_lea.vmem %s2, %s1557
    %v1559 = vld [vmem:[%s1558] sm:$0xff]
    %v1560 = vld [vmem:[%s1558 + $0x8] sm:$0xff]
    %v1561 = vld [vmem:[%s1558 + $0x10] sm:$0xff]
    %v1562 = vld [vmem:[%s1558 + $0x18] sm:$0xff]
    %v1563 = vld [vmem:[%s1558 + $0x20] sm:$0xff]
    %v1564 = vld [vmem:[%s1558 + $0x28] sm:$0xff]
    %v1565 = vld [vmem:[%s1558 + $0x30] sm:$0xff]
    %v1566 = vld [vmem:[%s1558 + $0x38] sm:$0xff]
    %v1575 = vunpack.c.l.b16 %v1559
    %v1576 = vunpack.c.h.b16 %v1559
    %v1577 = vunpack.c.l.b16 %v1560
    %v1578 = vunpack.c.h.b16 %v1560
    %v1579 = vunpack.c.l.b16 %v1561
    %v1580 = vunpack.c.h.b16 %v1561
    %v1581 = vunpack.c.l.b16 %v1562
    %v1582 = vunpack.c.h.b16 %v1562
    %v1583 = vunpack.c.l.b16 %v1563
    %v1584 = vunpack.c.h.b16 %v1563
    %v1585 = vunpack.c.l.b16 %v1564
    %v1586 = vunpack.c.h.b16 %v1564
    %v1587 = vunpack.c.l.b16 %v1565
    %v1588 = vunpack.c.h.b16 %v1565
    %v1589 = vunpack.c.l.b16 %v1566
    %v1590 = vunpack.c.h.b16 %v1566
    %v1591 = vpack.c.b16 %v1577, %v1575
    %v1592 = vpack.c.b16 %v1578, %v1576
    %v1593 = vpack.c.b16 %v1581, %v1579
    %v1594 = vpack.c.b16 %v1582, %v1580
    %v1595 = vpack.c.b16 %v1585, %v1583
    %v1596 = vpack.c.b16 %v1586, %v1584
    %v1597 = vpack.c.b16 %v1589, %v1587
    %v1598 = vpack.c.b16 %v1590, %v1588
    %1607 = vmatprep.subr.bf16.mxu0 %v1361
    %1608 = vmatpush1.bf16.msra.mxu0 %v1360
    %1609 = vmatprep.subr.bf16.mxu0 %v1363
    %1610 = vmatpush1.bf16.msra.mxu0 %v1362
    %1611 = vmatprep.subr.bf16.mxu0 %v1365
    %1612 = vmatpush1.bf16.msra.mxu0 %v1364
    %1613 = vmatprep.subr.bf16.mxu0 %v1367
    %1614 = vmatpush1.bf16.msra.mxu0 %v1366
    %1615 = vmatprep.subr.bf16.mxu0 %v1369
    %1616 = vmatpush1.bf16.msra.mxu0 %v1368
    %1617 = vmatprep.subr.bf16.mxu0 %v1371
    %1618 = vmatpush1.bf16.msra.mxu0 %v1370
    %1619 = vmatprep.subr.bf16.mxu0 %v1373
    %1620 = vmatpush1.bf16.msra.mxu0 %v1372
    %1621 = vmatprep.subr.bf16.mxu0 %v1375
    %1622 = vmatpush1.bf16.msra.mxu0 %v1374
    %1623 = vmatprep.subr.bf16.mxu0 %v1377
    %1624 = vmatpush1.bf16.msra.mxu0 %v1376
    %1625 = vmatprep.subr.bf16.mxu0 %v1379
    %1626 = vmatpush1.bf16.msra.mxu0 %v1378
    %1627 = vmatprep.subr.bf16.mxu0 %v1381
    %1628 = vmatpush1.bf16.msra.mxu0 %v1380
    %1629 = vmatprep.subr.bf16.mxu0 %v1383
    %1630 = vmatpush1.bf16.msra.mxu0 %v1382
    %1631 = vmatprep.subr.bf16.mxu0 %v1385
    %1632 = vmatpush1.bf16.msra.mxu0 %v1384
    %1633 = vmatprep.subr.bf16.mxu0 %v1387
    %1634 = vmatpush1.bf16.msra.mxu0 %v1386
    %1635 = vmatprep.subr.bf16.mxu0 %v1389
    %1636 = vmatpush1.bf16.msra.mxu0 %v1388
    %1637 = vmatprep.subr.bf16.mxu0 %v1391
    %1638 = vmatpush1.bf16.msra.mxu0 %v1390
    %1639 = vmatprep.mubr.bf16.mxu0 %v1592
    %1640 = vmatmul.mubr.bf16.gmra.mrb[0].mxu0 %v1591
    %v1641 = vpop.f32.mrb[0].mxu0
    %v1642 = vadd.f32 %v1217, %v1641
    %v1643 = vpop.f32.mrb[0].mxu0
    %v1644 = vadd.f32 %v1221, %v1643
    %v1645 = vpop.f32.mrb[0].mxu0
    %v1646 = vadd.f32 %v1217, %v1645
    %v1647 = vpop.f32.mrb[0].mxu0
    %v1648 = vadd.f32 %v1221, %v1647
    %1649 = vmatprep.mubr.bf16.mxu0 %v1594
    %1650 = vmatmul.mubr.bf16.gmra.mrb[0].mxu0 %v1593
    %v1651 = vpop.f32.mrb[0].mxu0
    %v1652 = vadd.f32 %v1217, %v1651
    %v1653 = vpop.f32.mrb[0].mxu0
    %v1654 = vadd.f32 %v1221, %v1653
    %v1655 = vpop.f32.mrb[0].mxu0
    %v1656 = vadd.f32 %v1217, %v1655
    %v1657 = vpop.f32.mrb[0].mxu0
    %v1658 = vadd.f32 %v1221, %v1657
    %1659 = vmatprep.mubr.bf16.mxu0 %v1596
    %1660 = vmatmul.mubr.bf16.gmra.mrb[0].mxu0 %v1595
    %v1661 = vpop.f32.mrb[0].mxu0
    %v1662 = vadd.f32 %v1217, %v1661
    %v1663 = vpop.f32.mrb[0].mxu0
    %v1664 = vadd.f32 %v1221, %v1663
    %v1665 = vpop.f32.mrb[0].mxu0
    %v1666 = vadd.f32 %v1217, %v1665
    %v1667 = vpop.f32.mrb[0].mxu0
    %v1668 = vadd.f32 %v1221, %v1667
    %1669 = vmatprep.mubr.bf16.mxu0 %v1598
    %1670 = vmatmul.mubr.bf16.gmra.mrb[0].mxu0 %v1597
    %v1671 = vpop.f32.mrb[0].mxu0
    %v1672 = vadd.f32 %v1217, %v1671
    %v1673 = vpop.f32.mrb[0].mxu0
    %v1674 = vadd.f32 %v1221, %v1673
    %v1675 = vpop.f32.mrb[0].mxu0
    %v1676 = vadd.f32 %v1217, %v1675
    %v1677 = vpop.f32.mrb[0].mxu0
    %v1678 = vadd.f32 %v1221, %v1677
    %1679 = vdwg.mxu0
    %v1680 = vmax.f32 %v1642, 0.0
    %v1681 = vmax.f32 %v1644, 0.0
    %v1682 = vmax.f32 %v1646, 0.0
    %v1683 = vmax.f32 %v1648, 0.0
    %v1684 = vmax.f32 %v1652, 0.0
    %v1685 = vmax.f32 %v1654, 0.0
    %v1686 = vmax.f32 %v1656, 0.0
    %v1687 = vmax.f32 %v1658, 0.0
    %v1688 = vmax.f32 %v1662, 0.0
    %v1689 = vmax.f32 %v1664, 0.0
    %v1690 = vmax.f32 %v1666, 0.0
    %v1691 = vmax.f32 %v1668, 0.0
    %v1692 = vmax.f32 %v1672, 0.0
    %v1693 = vmax.f32 %v1674, 0.0
    %v1694 = vmax.f32 %v1676, 0.0
    %v1695 = vmax.f32 %v1678, 0.0
    %v1696 = vadd.f32 %v1680, %v1682
    %v1697 = vadd.f32 %v1696, %v1684
    %v1698 = vadd.f32 %v1697, %v1686
    %v1699 = vadd.f32 %v1698, %v1688
    %v1700 = vadd.f32 %v1699, %v1690
    %v1701 = vadd.f32 %v1700, %v1692
    %v1702 = vadd.f32 %v1701, %v1694
    %v1703 = vrot.slane %v1702, 4
    %v1704 = vadd.f32 %v1702, %v1703
    %v1705 = vrot.slane %v1704, 2
    %v1706 = vadd.f32 %v1704, %v1705
    %v1707 = vrot.slane %v1706, 1
    %v1708 = vadd.f32 %v1706, %v1707
    %v1709 = vadd.f32 %v1681, %v1683
    %v1710 = vadd.f32 %v1709, %v1685
    %v1711 = vadd.f32 %v1710, %v1687
    %v1712 = vadd.f32 %v1711, %v1689
    %v1713 = vadd.f32 %v1712, %v1691
    %v1714 = vadd.f32 %v1713, %v1693
    %v1715 = vadd.f32 %v1714, %v1695
    %v1716 = vrot.slane %v1715, 4
    %v1717 = vadd.f32 %v1715, %v1716
    %v1718 = vrot.slane %v1717, 2
    %v1719 = vadd.f32 %v1717, %v1718
    %v1720 = vrot.slane %v1719, 1
    %v1721 = vadd.f32 %v1719, %v1720
    %v1722 = vadd.f32 %v1708, 0.0
    %v1723 = vadd.f32 %v1721, 0.0
    %v1724 = vmul.f32 %v1722, 0.015625
    %v1725 = vmul.f32 %v1723, 0.015625
    %v1726 = vxor.u32 %v1724, 2147483648
    %v1727 = vxor.u32 %v1725, 2147483648
    %v1728 = vmul.f32 %v1726, 1.442695
    %v1729 = vpow.pop %v1728
    %v1730 = vmul.f32 %v1727, 1.442695
    %v1731 = vpow.pop %v1730
    %v1732 = vadd.f32 %v1729, 1.0
    %v1733 = vadd.f32 %v1731, 1.0
    %v1734 = vrcp.pop %v1732
    %v1735 = vmul.f32 1.0, %v1734
    %v1736 = vrcp.pop %v1733
    %v1737 = vmul.f32 1.0, %v1736
    %v1738 = vadd.f32 %v1735, 1.0
    %v1739 = vadd.f32 %v1737, 1.0
    %s1740 = scalar_lea.vmem %s4, 768
    %v1741 = vld [vmem:[%s1740] sm:$0xff]
    %v1742 = vld [vmem:[%s1740 + $0x8] sm:$0xff]
    %v1743 = vld [vmem:[%s1740 + $0x10] sm:$0xff]
    %v1744 = vld [vmem:[%s1740 + $0x18] sm:$0xff]
    %v1745 = vld [vmem:[%s1740 + $0x20] sm:$0xff]
    %v1746 = vld [vmem:[%s1740 + $0x28] sm:$0xff]
    %v1747 = vld [vmem:[%s1740 + $0x30] sm:$0xff]
    %v1748 = vld [vmem:[%s1740 + $0x38] sm:$0xff]
    %v1749 = vld [vmem:[%s1740 + $0x40] sm:$0xff]
    %v1750 = vld [vmem:[%s1740 + $0x48] sm:$0xff]
    %v1751 = vld [vmem:[%s1740 + $0x50] sm:$0xff]
    %v1752 = vld [vmem:[%s1740 + $0x58] sm:$0xff]
    %v1753 = vld [vmem:[%s1740 + $0x60] sm:$0xff]
    %v1754 = vld [vmem:[%s1740 + $0x68] sm:$0xff]
    %v1755 = vld [vmem:[%s1740 + $0x70] sm:$0xff]
    %v1756 = vld [vmem:[%s1740 + $0x78] sm:$0xff]
    %v1757 = vld [vmem:[%s1740 + $0x80] sm:$0xff]
    %v1758 = vld [vmem:[%s1740 + $0x88] sm:$0xff]
    %v1759 = vld [vmem:[%s1740 + $0x90] sm:$0xff]
    %v1760 = vld [vmem:[%s1740 + $0x98] sm:$0xff]
    %v1761 = vld [vmem:[%s1740 + $0xa0] sm:$0xff]
    %v1762 = vld [vmem:[%s1740 + $0xa8] sm:$0xff]
    %v1763 = vld [vmem:[%s1740 + $0xb0] sm:$0xff]
    %v1764 = vld [vmem:[%s1740 + $0xb8] sm:$0xff]
    %v1765 = vld [vmem:[%s1740 + $0xc0] sm:$0xff]
    %v1766 = vld [vmem:[%s1740 + $0xc8] sm:$0xff]
    %v1767 = vld [vmem:[%s1740 + $0xd0] sm:$0xff]
    %v1768 = vld [vmem:[%s1740 + $0xd8] sm:$0xff]
    %v1769 = vld [vmem:[%s1740 + $0xe0] sm:$0xff]
    %v1770 = vld [vmem:[%s1740 + $0xe8] sm:$0xff]
    %v1771 = vld [vmem:[%s1740 + $0xf0] sm:$0xff]
    %v1772 = vld [vmem:[%s1740 + $0xf8] sm:$0xff]
    %s1773 = scalar_lea.vmem %s5, 3
    %v1774 = vld [vmem:[%s1773] ss:$4 sm:$0x3]
    %s1775 = smul.addr %s57, 4
    %s1776 = scalar_lea.vmem %s3, %s1775
    %v1777 = vld [vmem:[%s1776] sm:$0xff]
    %v1778 = vld [vmem:[%s1776 + $0x8] sm:$0xff]
    %v1779 = vld [vmem:[%s1776 + $0x10] sm:$0xff]
    %v1780 = vld [vmem:[%s1776 + $0x18] sm:$0xff]
    %v1781 = vld [vmem:[%s1776 + $0x20] sm:$0xff]
    %v1782 = vld [vmem:[%s1776 + $0x28] sm:$0xff]
    %v1783 = vld [vmem:[%s1776 + $0x30] sm:$0xff]
    %v1784 = vld [vmem:[%s1776 + $0x38] sm:$0xff]
    %v1786 = vlaneseq
    %v1787 = vshrl.u32 %v1786, 7
    %v1788 = vsub.s32 0, %v1787
    %v1789 = vrot.slane %v1774, %v1788
    %v1790 = vlaneseq
    %v1791 = vshrl.u32 %v1790, 7
    %v1792 = vsub.s32 1, %v1791
    %v1793 = vrot.slane %v1774, %v1792
    %v1804 = vunpack.c.l.b16 %v1777
    %v1805 = vunpack.c.h.b16 %v1777
    %v1806 = vunpack.c.l.b16 %v1778
    %v1807 = vunpack.c.h.b16 %v1778
    %v1808 = vunpack.c.l.b16 %v1779
    %v1809 = vunpack.c.h.b16 %v1779
    %v1810 = vunpack.c.l.b16 %v1780
    %v1811 = vunpack.c.h.b16 %v1780
    %v1812 = vunpack.c.l.b16 %v1781
    %v1813 = vunpack.c.h.b16 %v1781
    %v1814 = vunpack.c.l.b16 %v1782
    %v1815 = vunpack.c.h.b16 %v1782
    %v1816 = vunpack.c.l.b16 %v1783
    %v1817 = vunpack.c.h.b16 %v1783
    %v1818 = vunpack.c.l.b16 %v1784
    %v1819 = vunpack.c.h.b16 %v1784
    %v1820 = vpack.c.b16 %v1806, %v1804
    %v1821 = vpack.c.b16 %v1807, %v1805
    %v1822 = vpack.c.b16 %v1810, %v1808
    %v1823 = vpack.c.b16 %v1811, %v1809
    %v1824 = vpack.c.b16 %v1814, %v1812
    %v1825 = vpack.c.b16 %v1815, %v1813
    %v1826 = vpack.c.b16 %v1818, %v1816
    %v1827 = vpack.c.b16 %v1819, %v1817
    %v1868 = vunpack.c.l.b16 %v1741
    %v1869 = vunpack.c.h.b16 %v1741
    %v1870 = vunpack.c.l.b16 %v1742
    %v1871 = vunpack.c.h.b16 %v1742
    %v1872 = vunpack.c.l.b16 %v1743
    %v1873 = vunpack.c.h.b16 %v1743
    %v1874 = vunpack.c.l.b16 %v1744
    %v1875 = vunpack.c.h.b16 %v1744
    %v1876 = vunpack.c.l.b16 %v1745
    %v1877 = vunpack.c.h.b16 %v1745
    %v1878 = vunpack.c.l.b16 %v1746
    %v1879 = vunpack.c.h.b16 %v1746
    %v1880 = vunpack.c.l.b16 %v1747
    %v1881 = vunpack.c.h.b16 %v1747
    %v1882 = vunpack.c.l.b16 %v1748
    %v1883 = vunpack.c.h.b16 %v1748
    %v1884 = vunpack.c.l.b16 %v1749
    %v1885 = vunpack.c.h.b16 %v1749
    %v1886 = vunpack.c.l.b16 %v1750
    %v1887 = vunpack.c.h.b16 %v1750
    %v1888 = vunpack.c.l.b16 %v1751
    %v1889 = vunpack.c.h.b16 %v1751
    %v1890 = vunpack.c.l.b16 %v1752
    %v1891 = vunpack.c.h.b16 %v1752
    %v1892 = vunpack.c.l.b16 %v1753
    %v1893 = vunpack.c.h.b16 %v1753
    %v1894 = vunpack.c.l.b16 %v1754
    %v1895 = vunpack.c.h.b16 %v1754
    %v1896 = vunpack.c.l.b16 %v1755
    %v1897 = vunpack.c.h.b16 %v1755
    %v1898 = vunpack.c.l.b16 %v1756
    %v1899 = vunpack.c.h.b16 %v1756
    %v1900 = vunpack.c.l.b16 %v1757
    %v1901 = vunpack.c.h.b16 %v1757
    %v1902 = vunpack.c.l.b16 %v1758
    %v1903 = vunpack.c.h.b16 %v1758
    %v1904 = vunpack.c.l.b16 %v1759
    %v1905 = vunpack.c.h.b16 %v1759
    %v1906 = vunpack.c.l.b16 %v1760
    %v1907 = vunpack.c.h.b16 %v1760
    %v1908 = vunpack.c.l.b16 %v1761
    %v1909 = vunpack.c.h.b16 %v1761
    %v1910 = vunpack.c.l.b16 %v1762
    %v1911 = vunpack.c.h.b16 %v1762
    %v1912 = vunpack.c.l.b16 %v1763
    %v1913 = vunpack.c.h.b16 %v1763
    %v1914 = vunpack.c.l.b16 %v1764
    %v1915 = vunpack.c.h.b16 %v1764
    %v1916 = vunpack.c.l.b16 %v1765
    %v1917 = vunpack.c.h.b16 %v1765
    %v1918 = vunpack.c.l.b16 %v1766
    %v1919 = vunpack.c.h.b16 %v1766
    %v1920 = vunpack.c.l.b16 %v1767
    %v1921 = vunpack.c.h.b16 %v1767
    %v1922 = vunpack.c.l.b16 %v1768
    %v1923 = vunpack.c.h.b16 %v1768
    %v1924 = vunpack.c.l.b16 %v1769
    %v1925 = vunpack.c.h.b16 %v1769
    %v1926 = vunpack.c.l.b16 %v1770
    %v1927 = vunpack.c.h.b16 %v1770
    %v1928 = vunpack.c.l.b16 %v1771
    %v1929 = vunpack.c.h.b16 %v1771
    %v1930 = vunpack.c.l.b16 %v1772
    %v1931 = vunpack.c.h.b16 %v1772
    %v1932 = vpack.c.b16 %v1870, %v1868
    %v1933 = vpack.c.b16 %v1871, %v1869
    %v1934 = vpack.c.b16 %v1874, %v1872
    %v1935 = vpack.c.b16 %v1875, %v1873
    %v1936 = vpack.c.b16 %v1878, %v1876
    %v1937 = vpack.c.b16 %v1879, %v1877
    %v1938 = vpack.c.b16 %v1882, %v1880
    %v1939 = vpack.c.b16 %v1883, %v1881
    %v1940 = vpack.c.b16 %v1886, %v1884
    %v1941 = vpack.c.b16 %v1887, %v1885
    %v1942 = vpack.c.b16 %v1890, %v1888
    %v1943 = vpack.c.b16 %v1891, %v1889
    %v1944 = vpack.c.b16 %v1894, %v1892
    %v1945 = vpack.c.b16 %v1895, %v1893
    %v1946 = vpack.c.b16 %v1898, %v1896
    %v1947 = vpack.c.b16 %v1899, %v1897
    %v1948 = vpack.c.b16 %v1902, %v1900
    %v1949 = vpack.c.b16 %v1903, %v1901
    %v1950 = vpack.c.b16 %v1906, %v1904
    %v1951 = vpack.c.b16 %v1907, %v1905
    %v1952 = vpack.c.b16 %v1910, %v1908
    %v1953 = vpack.c.b16 %v1911, %v1909
    %v1954 = vpack.c.b16 %v1914, %v1912
    %v1955 = vpack.c.b16 %v1915, %v1913
    %v1956 = vpack.c.b16 %v1918, %v1916
    %v1957 = vpack.c.b16 %v1919, %v1917
    %v1958 = vpack.c.b16 %v1922, %v1920
    %v1959 = vpack.c.b16 %v1923, %v1921
    %v1960 = vpack.c.b16 %v1926, %v1924
    %v1961 = vpack.c.b16 %v1927, %v1925
    %v1962 = vpack.c.b16 %v1930, %v1928
    %v1963 = vpack.c.b16 %v1931, %v1929
    %1996 = vmatprep.subr.bf16.mxu0 %v1933
    %1997 = vmatpush1.bf16.msra.mxu0 %v1932
    %1998 = vmatprep.subr.bf16.mxu0 %v1935
    %1999 = vmatpush1.bf16.msra.mxu0 %v1934
    %2000 = vmatprep.subr.bf16.mxu0 %v1937
    %2001 = vmatpush1.bf16.msra.mxu0 %v1936
    %2002 = vmatprep.subr.bf16.mxu0 %v1939
    %2003 = vmatpush1.bf16.msra.mxu0 %v1938
    %2004 = vmatprep.subr.bf16.mxu0 %v1941
    %2005 = vmatpush1.bf16.msra.mxu0 %v1940
    %2006 = vmatprep.subr.bf16.mxu0 %v1943
    %2007 = vmatpush1.bf16.msra.mxu0 %v1942
    %2008 = vmatprep.subr.bf16.mxu0 %v1945
    %2009 = vmatpush1.bf16.msra.mxu0 %v1944
    %2010 = vmatprep.subr.bf16.mxu0 %v1947
    %2011 = vmatpush1.bf16.msra.mxu0 %v1946
    %2012 = vmatprep.subr.bf16.mxu0 %v1949
    %2013 = vmatpush1.bf16.msra.mxu0 %v1948
    %2014 = vmatprep.subr.bf16.mxu0 %v1951
    %2015 = vmatpush1.bf16.msra.mxu0 %v1950
    %2016 = vmatprep.subr.bf16.mxu0 %v1953
    %2017 = vmatpush1.bf16.msra.mxu0 %v1952
    %2018 = vmatprep.subr.bf16.mxu0 %v1955
    %2019 = vmatpush1.bf16.msra.mxu0 %v1954
    %2020 = vmatprep.subr.bf16.mxu0 %v1957
    %2021 = vmatpush1.bf16.msra.mxu0 %v1956
    %2022 = vmatprep.subr.bf16.mxu0 %v1959
    %2023 = vmatpush1.bf16.msra.mxu0 %v1958
    %2024 = vmatprep.subr.bf16.mxu0 %v1961
    %2025 = vmatpush1.bf16.msra.mxu0 %v1960
    %2026 = vmatprep.subr.bf16.mxu0 %v1963
    %2027 = vmatpush1.bf16.msra.mxu0 %v1962
    %2028 = vmatprep.mubr.bf16.mxu0 %v1821
    %2029 = vmatmul.mubr.bf16.gmra.mrb[0].mxu0 %v1820
    %v2030 = vpop.f32.mrb[0].mxu0
    %v2031 = vadd.f32 %v1789, %v2030
    %v2032 = vpop.f32.mrb[0].mxu0
    %v2033 = vadd.f32 %v1793, %v2032
    %v2034 = vpop.f32.mrb[0].mxu0
    %v2035 = vadd.f32 %v1789, %v2034
    %v2036 = vpop.f32.mrb[0].mxu0
    %v2037 = vadd.f32 %v1793, %v2036
    %2038 = vmatprep.mubr.bf16.mxu0 %v1823
    %2039 = vmatmul.mubr.bf16.gmra.mrb[0].mxu0 %v1822
    %v2040 = vpop.f32.mrb[0].mxu0
    %v2041 = vadd.f32 %v1789, %v2040
    %v2042 = vpop.f32.mrb[0].mxu0
    %v2043 = vadd.f32 %v1793, %v2042
    %v2044 = vpop.f32.mrb[0].mxu0
    %v2045 = vadd.f32 %v1789, %v2044
    %v2046 = vpop.f32.mrb[0].mxu0
    %v2047 = vadd.f32 %v1793, %v2046
    %2048 = vmatprep.mubr.bf16.mxu0 %v1825
    %2049 = vmatmul.mubr.bf16.gmra.mrb[0].mxu0 %v1824
    %v2050 = vpop.f32.mrb[0].mxu0
    %v2051 = vadd.f32 %v1789, %v2050
    %v2052 = vpop.f32.mrb[0].mxu0
    %v2053 = vadd.f32 %v1793, %v2052
    %v2054 = vpop.f32.mrb[0].mxu0
    %v2055 = vadd.f32 %v1789, %v2054
    %v2056 = vpop.f32.mrb[0].mxu0
    %v2057 = vadd.f32 %v1793, %v2056
    %2058 = vmatprep.mubr.bf16.mxu0 %v1827
    %2059 = vmatmul.mubr.bf16.gmra.mrb[0].mxu0 %v1826
    %v2060 = vpop.f32.mrb[0].mxu0
    %v2061 = vadd.f32 %v1789, %v2060
    %v2062 = vpop.f32.mrb[0].mxu0
    %v2063 = vadd.f32 %v1793, %v2062
    %v2064 = vpop.f32.mrb[0].mxu0
    %v2065 = vadd.f32 %v1789, %v2064
    %v2066 = vpop.f32.mrb[0].mxu0
    %v2067 = vadd.f32 %v1793, %v2066
    %2068 = vdwg.mxu0
    %v2069 = vmax.f32 %v2031, 0.0
    %v2070 = vmax.f32 %v2033, 0.0
    %v2071 = vmax.f32 %v2035, 0.0
    %v2072 = vmax.f32 %v2037, 0.0
    %v2073 = vmax.f32 %v2041, 0.0
    %v2074 = vmax.f32 %v2043, 0.0
    %v2075 = vmax.f32 %v2045, 0.0
    %v2076 = vmax.f32 %v2047, 0.0
    %v2077 = vmax.f32 %v2051, 0.0
    %v2078 = vmax.f32 %v2053, 0.0
    %v2079 = vmax.f32 %v2055, 0.0
    %v2080 = vmax.f32 %v2057, 0.0
    %v2081 = vmax.f32 %v2061, 0.0
    %v2082 = vmax.f32 %v2063, 0.0
    %v2083 = vmax.f32 %v2065, 0.0
    %v2084 = vmax.f32 %v2067, 0.0
    %v2085 = vadd.f32 %v2069, %v2071
    %v2086 = vadd.f32 %v2085, %v2073
    %v2087 = vadd.f32 %v2086, %v2075
    %v2088 = vadd.f32 %v2087, %v2077
    %v2089 = vadd.f32 %v2088, %v2079
    %v2090 = vadd.f32 %v2089, %v2081
    %v2091 = vadd.f32 %v2090, %v2083
    %v2092 = vrot.slane %v2091, 4
    %v2093 = vadd.f32 %v2091, %v2092
    %v2094 = vrot.slane %v2093, 2
    %v2095 = vadd.f32 %v2093, %v2094
    %v2096 = vrot.slane %v2095, 1
    %v2097 = vadd.f32 %v2095, %v2096
    %v2098 = vadd.f32 %v2070, %v2072
    %v2099 = vadd.f32 %v2098, %v2074
    %v2100 = vadd.f32 %v2099, %v2076
    %v2101 = vadd.f32 %v2100, %v2078
    %v2102 = vadd.f32 %v2101, %v2080
    %v2103 = vadd.f32 %v2102, %v2082
    %v2104 = vadd.f32 %v2103, %v2084
    %v2105 = vrot.slane %v2104, 4
    %v2106 = vadd.f32 %v2104, %v2105
    %v2107 = vrot.slane %v2106, 2
    %v2108 = vadd.f32 %v2106, %v2107
    %v2109 = vrot.slane %v2108, 1
    %v2110 = vadd.f32 %v2108, %v2109
    %v2111 = vadd.f32 %v2097, 0.0
    %v2112 = vadd.f32 %v2110, 0.0
    %v2113 = vmul.f32 %v2111, 0.015625
    %v2114 = vmul.f32 %v2112, 0.015625
    %v2115 = vxor.u32 %v2113, 2147483648
    %v2116 = vxor.u32 %v2114, 2147483648
    %v2117 = vmul.f32 %v2115, 1.442695
    %v2118 = vpow.pop %v2117
    %v2119 = vmul.f32 %v2116, 1.442695
    %v2120 = vpow.pop %v2119
    %v2121 = vadd.f32 %v2118, 1.0
    %v2122 = vadd.f32 %v2120, 1.0
    %v2123 = vrcp.pop %v2121
    %v2124 = vmul.f32 1.0, %v2123
    %v2125 = vrcp.pop %v2122
    %v2126 = vmul.f32 1.0, %v2125
    %v2127 = vadd.f32 %v2124, 1.0
    %v2128 = vadd.f32 %v2126, 1.0
    %s2129 = smul.addr %s412, 4
    %s2130 = scalar_lea.vmem %s3, %s2129
    %v2131 = vld [vmem:[%s2130] sm:$0xff]
    %v2132 = vld [vmem:[%s2130 + $0x8] sm:$0xff]
    %v2133 = vld [vmem:[%s2130 + $0x10] sm:$0xff]
    %v2134 = vld [vmem:[%s2130 + $0x18] sm:$0xff]
    %v2135 = vld [vmem:[%s2130 + $0x20] sm:$0xff]
    %v2136 = vld [vmem:[%s2130 + $0x28] sm:$0xff]
    %v2137 = vld [vmem:[%s2130 + $0x30] sm:$0xff]
    %v2138 = vld [vmem:[%s2130 + $0x38] sm:$0xff]
    %v2147 = vunpack.c.l.b16 %v2131
    %v2148 = vunpack.c.h.b16 %v2131
    %v2149 = vunpack.c.l.b16 %v2132
    %v2150 = vunpack.c.h.b16 %v2132
    %v2151 = vunpack.c.l.b16 %v2133
    %v2152 = vunpack.c.h.b16 %v2133
    %v2153 = vunpack.c.l.b16 %v2134
    %v2154 = vunpack.c.h.b16 %v2134
    %v2155 = vunpack.c.l.b16 %v2135
    %v2156 = vunpack.c.h.b16 %v2135
    %v2157 = vunpack.c.l.b16 %v2136
    %v2158 = vunpack.c.h.b16 %v2136
    %v2159 = vunpack.c.l.b16 %v2137
    %v2160 = vunpack.c.h.b16 %v2137
    %v2161 = vunpack.c.l.b16 %v2138
    %v2162 = vunpack.c.h.b16 %v2138
    %v2163 = vpack.c.b16 %v2149, %v2147
    %v2164 = vpack.c.b16 %v2150, %v2148
    %v2165 = vpack.c.b16 %v2153, %v2151
    %v2166 = vpack.c.b16 %v2154, %v2152
    %v2167 = vpack.c.b16 %v2157, %v2155
    %v2168 = vpack.c.b16 %v2158, %v2156
    %v2169 = vpack.c.b16 %v2161, %v2159
    %v2170 = vpack.c.b16 %v2162, %v2160
    %2179 = vmatprep.subr.bf16.mxu0 %v1933
    %2180 = vmatpush1.bf16.msra.mxu0 %v1932
    %2181 = vmatprep.subr.bf16.mxu0 %v1935
    %2182 = vmatpush1.bf16.msra.mxu0 %v1934
    %2183 = vmatprep.subr.bf16.mxu0 %v1937
    %2184 = vmatpush1.bf16.msra.mxu0 %v1936
    %2185 = vmatprep.subr.bf16.mxu0 %v1939
    %2186 = vmatpush1.bf16.msra.mxu0 %v1938
    %2187 = vmatprep.subr.bf16.mxu0 %v1941
    %2188 = vmatpush1.bf16.msra.mxu0 %v1940
    %2189 = vmatprep.subr.bf16.mxu0 %v1943
    %2190 = vmatpush1.bf16.msra.mxu0 %v1942
    %2191 = vmatprep.subr.bf16.mxu0 %v1945
    %2192 = vmatpush1.bf16.msra.mxu0 %v1944
    %2193 = vmatprep.subr.bf16.mxu0 %v1947
    %2194 = vmatpush1.bf16.msra.mxu0 %v1946
    %2195 = vmatprep.subr.bf16.mxu0 %v1949
    %2196 = vmatpush1.bf16.msra.mxu0 %v1948
    %2197 = vmatprep.subr.bf16.mxu0 %v1951
    %2198 = vmatpush1.bf16.msra.mxu0 %v1950
    %2199 = vmatprep.subr.bf16.mxu0 %v1953
    %2200 = vmatpush1.bf16.msra.mxu0 %v1952
    %2201 = vmatprep.subr.bf16.mxu0 %v1955
    %2202 = vmatpush1.bf16.msra.mxu0 %v1954
    %2203 = vmatprep.subr.bf16.mxu0 %v1957
    %2204 = vmatpush1.bf16.msra.mxu0 %v1956
    %2205 = vmatprep.subr.bf16.mxu0 %v1959
    %2206 = vmatpush1.bf16.msra.mxu0 %v1958
    %2207 = vmatprep.subr.bf16.mxu0 %v1961
    %2208 = vmatpush1.bf16.msra.mxu0 %v1960
    %2209 = vmatprep.subr.bf16.mxu0 %v1963
    %2210 = vmatpush1.bf16.msra.mxu0 %v1962
    %2211 = vmatprep.mubr.bf16.mxu0 %v2164
    %2212 = vmatmul.mubr.bf16.gmra.mrb[0].mxu0 %v2163
    %v2213 = vpop.f32.mrb[0].mxu0
    %v2214 = vadd.f32 %v1789, %v2213
    %v2215 = vpop.f32.mrb[0].mxu0
    %v2216 = vadd.f32 %v1793, %v2215
    %v2217 = vpop.f32.mrb[0].mxu0
    %v2218 = vadd.f32 %v1789, %v2217
    %v2219 = vpop.f32.mrb[0].mxu0
    %v2220 = vadd.f32 %v1793, %v2219
    %2221 = vmatprep.mubr.bf16.mxu0 %v2166
    %2222 = vmatmul.mubr.bf16.gmra.mrb[0].mxu0 %v2165
    %v2223 = vpop.f32.mrb[0].mxu0
    %v2224 = vadd.f32 %v1789, %v2223
    %v2225 = vpop.f32.mrb[0].mxu0
    %v2226 = vadd.f32 %v1793, %v2225
    %v2227 = vpop.f32.mrb[0].mxu0
    %v2228 = vadd.f32 %v1789, %v2227
    %v2229 = vpop.f32.mrb[0].mxu0
    %v2230 = vadd.f32 %v1793, %v2229
    %2231 = vmatprep.mubr.bf16.mxu0 %v2168
    %2232 = vmatmul.mubr.bf16.gmra.mrb[0].mxu0 %v2167
    %v2233 = vpop.f32.mrb[0].mxu0
    %v2234 = vadd.f32 %v1789, %v2233
    %v2235 = vpop.f32.mrb[0].mxu0
    %v2236 = vadd.f32 %v1793, %v2235
    %v2237 = vpop.f32.mrb[0].mxu0
    %v2238 = vadd.f32 %v1789, %v2237
    %v2239 = vpop.f32.mrb[0].mxu0
    %v2240 = vadd.f32 %v1793, %v2239
    %2241 = vmatprep.mubr.bf16.mxu0 %v2170
    %2242 = vmatmul.mubr.bf16.gmra.mrb[0].mxu0 %v2169
    %v2243 = vpop.f32.mrb[0].mxu0
    %v2244 = vadd.f32 %v1789, %v2243
    %v2245 = vpop.f32.mrb[0].mxu0
    %v2246 = vadd.f32 %v1793, %v2245
    %v2247 = vpop.f32.mrb[0].mxu0
    %v2248 = vadd.f32 %v1789, %v2247
    %v2249 = vpop.f32.mrb[0].mxu0
    %v2250 = vadd.f32 %v1793, %v2249
    %2251 = vdwg.mxu0
    %v2252 = vmax.f32 %v2214, 0.0
    %v2253 = vmax.f32 %v2216, 0.0
    %v2254 = vmax.f32 %v2218, 0.0
    %v2255 = vmax.f32 %v2220, 0.0
    %v2256 = vmax.f32 %v2224, 0.0
    %v2257 = vmax.f32 %v2226, 0.0
    %v2258 = vmax.f32 %v2228, 0.0
    %v2259 = vmax.f32 %v2230, 0.0
    %v2260 = vmax.f32 %v2234, 0.0
    %v2261 = vmax.f32 %v2236, 0.0
    %v2262 = vmax.f32 %v2238, 0.0
    %v2263 = vmax.f32 %v2240, 0.0
    %v2264 = vmax.f32 %v2244, 0.0
    %v2265 = vmax.f32 %v2246, 0.0
    %v2266 = vmax.f32 %v2248, 0.0
    %v2267 = vmax.f32 %v2250, 0.0
    %v2268 = vadd.f32 %v2252, %v2254
    %v2269 = vadd.f32 %v2268, %v2256
    %v2270 = vadd.f32 %v2269, %v2258
    %v2271 = vadd.f32 %v2270, %v2260
    %v2272 = vadd.f32 %v2271, %v2262
    %v2273 = vadd.f32 %v2272, %v2264
    %v2274 = vadd.f32 %v2273, %v2266
    %v2275 = vrot.slane %v2274, 4
    %v2276 = vadd.f32 %v2274, %v2275
    %v2277 = vrot.slane %v2276, 2
    %v2278 = vadd.f32 %v2276, %v2277
    %v2279 = vrot.slane %v2278, 1
    %v2280 = vadd.f32 %v2278, %v2279
    %v2281 = vadd.f32 %v2253, %v2255
    %v2282 = vadd.f32 %v2281, %v2257
    %v2283 = vadd.f32 %v2282, %v2259
    %v2284 = vadd.f32 %v2283, %v2261
    %v2285 = vadd.f32 %v2284, %v2263
    %v2286 = vadd.f32 %v2285, %v2265
    %v2287 = vadd.f32 %v2286, %v2267
    %v2288 = vrot.slane %v2287, 4
    %v2289 = vadd.f32 %v2287, %v2288
    %v2290 = vrot.slane %v2289, 2
    %v2291 = vadd.f32 %v2289, %v2290
    %v2292 = vrot.slane %v2291, 1
    %v2293 = vadd.f32 %v2291, %v2292
    %v2294 = vadd.f32 %v2280, 0.0
    %v2295 = vadd.f32 %v2293, 0.0
    %v2296 = vmul.f32 %v2294, 0.015625
    %v2297 = vmul.f32 %v2295, 0.015625
    %v2298 = vxor.u32 %v2296, 2147483648
    %v2299 = vxor.u32 %v2297, 2147483648
    %v2300 = vmul.f32 %v2298, 1.442695
    %v2301 = vpow.pop %v2300
    %v2302 = vmul.f32 %v2299, 1.442695
    %v2303 = vpow.pop %v2302
    %v2304 = vadd.f32 %v2301, 1.0
    %v2305 = vadd.f32 %v2303, 1.0
    %v2306 = vrcp.pop %v2304
    %v2307 = vmul.f32 1.0, %v2306
    %v2308 = vrcp.pop %v2305
    %v2309 = vmul.f32 1.0, %v2308
    %v2310 = vadd.f32 %v2307, 1.0
    %v2311 = vadd.f32 %v2309, 1.0
    %v2312 = vunpack.c.l.bf16 %v60
    %v2313 = vunpack.c.h.bf16 %v60
    %v2314 = vunpack.c.l.bf16 %v61
    %v2315 = vunpack.c.h.bf16 %v61
    %v2316 = vunpack.c.l.bf16 %v62
    %v2317 = vunpack.c.h.bf16 %v62
    %v2318 = vunpack.c.l.bf16 %v63
    %v2319 = vunpack.c.h.bf16 %v63
    %v2320 = vunpack.c.l.bf16 %v64
    %v2321 = vunpack.c.h.bf16 %v64
    %v2322 = vunpack.c.l.bf16 %v65
    %v2323 = vunpack.c.h.bf16 %v65
    %v2324 = vunpack.c.l.bf16 %v66
    %v2325 = vunpack.c.h.bf16 %v66
    %v2326 = vunpack.c.l.bf16 %v67
    %v2327 = vunpack.c.h.bf16 %v67
    %v2328 = vmul.f32 %v2312, %v410
    %v2329 = vmul.f32 %v2313, %v411
    %v2330 = vmul.f32 %v2314, %v410
    %v2331 = vmul.f32 %v2315, %v411
    %v2332 = vmul.f32 %v2316, %v410
    %v2333 = vmul.f32 %v2317, %v411
    %v2334 = vmul.f32 %v2318, %v410
    %v2335 = vmul.f32 %v2319, %v411
    %v2336 = vmul.f32 %v2320, %v410
    %v2337 = vmul.f32 %v2321, %v411
    %v2338 = vmul.f32 %v2322, %v410
    %v2339 = vmul.f32 %v2323, %v411
    %v2340 = vmul.f32 %v2324, %v410
    %v2341 = vmul.f32 %v2325, %v411
    %v2342 = vmul.f32 %v2326, %v410
    %v2343 = vmul.f32 %v2327, %v411
    %v2344 = vunpack.c.l.bf16 %v633
    %v2345 = vunpack.c.h.bf16 %v633
    %v2346 = vunpack.c.l.bf16 %v634
    %v2347 = vunpack.c.h.bf16 %v634
    %v2348 = vunpack.c.l.bf16 %v635
    %v2349 = vunpack.c.h.bf16 %v635
    %v2350 = vunpack.c.l.bf16 %v636
    %v2351 = vunpack.c.h.bf16 %v636
    %v2352 = vunpack.c.l.bf16 %v637
    %v2353 = vunpack.c.h.bf16 %v637
    %v2354 = vunpack.c.l.bf16 %v638
    %v2355 = vunpack.c.h.bf16 %v638
    %v2356 = vunpack.c.l.bf16 %v639
    %v2357 = vunpack.c.h.bf16 %v639
    %v2358 = vunpack.c.l.bf16 %v640
    %v2359 = vunpack.c.h.bf16 %v640
    %v2360 = vmul.f32 %v2344, %v983
    %v2361 = vmul.f32 %v2345, %v984
    %v2362 = vmul.f32 %v2346, %v983
    %v2363 = vmul.f32 %v2347, %v984
    %v2364 = vmul.f32 %v2348, %v983
    %v2365 = vmul.f32 %v2349, %v984
    %v2366 = vmul.f32 %v2350, %v983
    %v2367 = vmul.f32 %v2351, %v984
    %v2368 = vmul.f32 %v2352, %v983
    %v2369 = vmul.f32 %v2353, %v984
    %v2370 = vmul.f32 %v2354, %v983
    %v2371 = vmul.f32 %v2355, %v984
    %v2372 = vmul.f32 %v2356, %v983
    %v2373 = vmul.f32 %v2357, %v984
    %v2374 = vmul.f32 %v2358, %v983
    %v2375 = vmul.f32 %v2359, %v984
    %v2376 = vadd.f32 %v2328, %v2360
    %v2377 = vadd.f32 %v2329, %v2361
    %v2378 = vadd.f32 %v2330, %v2362
    %v2379 = vadd.f32 %v2331, %v2363
    %v2380 = vadd.f32 %v2332, %v2364
    %v2381 = vadd.f32 %v2333, %v2365
    %v2382 = vadd.f32 %v2334, %v2366
    %v2383 = vadd.f32 %v2335, %v2367
    %v2384 = vadd.f32 %v2336, %v2368
    %v2385 = vadd.f32 %v2337, %v2369
    %v2386 = vadd.f32 %v2338, %v2370
    %v2387 = vadd.f32 %v2339, %v2371
    %v2388 = vadd.f32 %v2340, %v2372
    %v2389 = vadd.f32 %v2341, %v2373
    %v2390 = vadd.f32 %v2342, %v2374
    %v2391 = vadd.f32 %v2343, %v2375
    %v2392 = vunpack.c.l.bf16 %v1205
    %v2393 = vunpack.c.h.bf16 %v1205
    %v2394 = vunpack.c.l.bf16 %v1206
    %v2395 = vunpack.c.h.bf16 %v1206
    %v2396 = vunpack.c.l.bf16 %v1207
    %v2397 = vunpack.c.h.bf16 %v1207
    %v2398 = vunpack.c.l.bf16 %v1208
    %v2399 = vunpack.c.h.bf16 %v1208
    %v2400 = vunpack.c.l.bf16 %v1209
    %v2401 = vunpack.c.h.bf16 %v1209
    %v2402 = vunpack.c.l.bf16 %v1210
    %v2403 = vunpack.c.h.bf16 %v1210
    %v2404 = vunpack.c.l.bf16 %v1211
    %v2405 = vunpack.c.h.bf16 %v1211
    %v2406 = vunpack.c.l.bf16 %v1212
    %v2407 = vunpack.c.h.bf16 %v1212
    %v2408 = vmul.f32 %v2392, %v1555
    %v2409 = vmul.f32 %v2393, %v1556
    %v2410 = vmul.f32 %v2394, %v1555
    %v2411 = vmul.f32 %v2395, %v1556
    %v2412 = vmul.f32 %v2396, %v1555
    %v2413 = vmul.f32 %v2397, %v1556
    %v2414 = vmul.f32 %v2398, %v1555
    %v2415 = vmul.f32 %v2399, %v1556
    %v2416 = vmul.f32 %v2400, %v1555
    %v2417 = vmul.f32 %v2401, %v1556
    %v2418 = vmul.f32 %v2402, %v1555
    %v2419 = vmul.f32 %v2403, %v1556
    %v2420 = vmul.f32 %v2404, %v1555
    %v2421 = vmul.f32 %v2405, %v1556
    %v2422 = vmul.f32 %v2406, %v1555
    %v2423 = vmul.f32 %v2407, %v1556
    %v2424 = vadd.f32 %v2376, %v2408
    %v2425 = vadd.f32 %v2377, %v2409
    %v2426 = vadd.f32 %v2378, %v2410
    %v2427 = vadd.f32 %v2379, %v2411
    %v2428 = vadd.f32 %v2380, %v2412
    %v2429 = vadd.f32 %v2381, %v2413
    %v2430 = vadd.f32 %v2382, %v2414
    %v2431 = vadd.f32 %v2383, %v2415
    %v2432 = vadd.f32 %v2384, %v2416
    %v2433 = vadd.f32 %v2385, %v2417
    %v2434 = vadd.f32 %v2386, %v2418
    %v2435 = vadd.f32 %v2387, %v2419
    %v2436 = vadd.f32 %v2388, %v2420
    %v2437 = vadd.f32 %v2389, %v2421
    %v2438 = vadd.f32 %v2390, %v2422
    %v2439 = vadd.f32 %v2391, %v2423
    %v2440 = vunpack.c.l.bf16 %v1777
    %v2441 = vunpack.c.h.bf16 %v1777
    %v2442 = vunpack.c.l.bf16 %v1778
    %v2443 = vunpack.c.h.bf16 %v1778
    %v2444 = vunpack.c.l.bf16 %v1779
    %v2445 = vunpack.c.h.bf16 %v1779
    %v2446 = vunpack.c.l.bf16 %v1780
    %v2447 = vunpack.c.h.bf16 %v1780
    %v2448 = vunpack.c.l.bf16 %v1781
    %v2449 = vunpack.c.h.bf16 %v1781
    %v2450 = vunpack.c.l.bf16 %v1782
    %v2451 = vunpack.c.h.bf16 %v1782
    %v2452 = vunpack.c.l.bf16 %v1783
    %v2453 = vunpack.c.h.bf16 %v1783
    %v2454 = vunpack.c.l.bf16 %v1784
    %v2455 = vunpack.c.h.bf16 %v1784
    %v2456 = vmul.f32 %v2440, %v2127
    %v2457 = vmul.f32 %v2441, %v2128
    %v2458 = vmul.f32 %v2442, %v2127
    %v2459 = vmul.f32 %v2443, %v2128
    %v2460 = vmul.f32 %v2444, %v2127
    %v2461 = vmul.f32 %v2445, %v2128
    %v2462 = vmul.f32 %v2446, %v2127
    %v2463 = vmul.f32 %v2447, %v2128
    %v2464 = vmul.f32 %v2448, %v2127
    %v2465 = vmul.f32 %v2449, %v2128
    %v2466 = vmul.f32 %v2450, %v2127
    %v2467 = vmul.f32 %v2451, %v2128
    %v2468 = vmul.f32 %v2452, %v2127
    %v2469 = vmul.f32 %v2453, %v2128
    %v2470 = vmul.f32 %v2454, %v2127
    %v2471 = vmul.f32 %v2455, %v2128
    %v2472 = vadd.f32 %v2424, %v2456
    %v2473 = vadd.f32 %v2425, %v2457
    %v2474 = vadd.f32 %v2426, %v2458
    %v2475 = vadd.f32 %v2427, %v2459
    %v2476 = vadd.f32 %v2428, %v2460
    %v2477 = vadd.f32 %v2429, %v2461
    %v2478 = vadd.f32 %v2430, %v2462
    %v2479 = vadd.f32 %v2431, %v2463
    %v2480 = vadd.f32 %v2432, %v2464
    %v2481 = vadd.f32 %v2433, %v2465
    %v2482 = vadd.f32 %v2434, %v2466
    %v2483 = vadd.f32 %v2435, %v2467
    %v2484 = vadd.f32 %v2436, %v2468
    %v2485 = vadd.f32 %v2437, %v2469
    %v2486 = vadd.f32 %v2438, %v2470
    %v2487 = vadd.f32 %v2439, %v2471
    %s2488 = smul.addr %s57, 8
    %s2489 = scalar_lea.vmem [#allocation2], %s2488
    %2490 = vst [vmem:[%s2489] sm:$0xff] %v2472
    %2491 = vst [vmem:[%s2489 + $0x8] sm:$0xff] %v2473
    %2492 = vst [vmem:[%s2489 + $0x10] sm:$0xff] %v2474
    %2493 = vst [vmem:[%s2489 + $0x18] sm:$0xff] %v2475
    %2494 = vst [vmem:[%s2489 + $0x20] sm:$0xff] %v2476
    %2495 = vst [vmem:[%s2489 + $0x28] sm:$0xff] %v2477
    %2496 = vst [vmem:[%s2489 + $0x30] sm:$0xff] %v2478
    %2497 = vst [vmem:[%s2489 + $0x38] sm:$0xff] %v2479
    %2498 = vst [vmem:[%s2489 + $0x40] sm:$0xff] %v2480
    %2499 = vst [vmem:[%s2489 + $0x48] sm:$0xff] %v2481
    %2500 = vst [vmem:[%s2489 + $0x50] sm:$0xff] %v2482
    %2501 = vst [vmem:[%s2489 + $0x58] sm:$0xff] %v2483
    %2502 = vst [vmem:[%s2489 + $0x60] sm:$0xff] %v2484
    %2503 = vst [vmem:[%s2489 + $0x68] sm:$0xff] %v2485
    %2504 = vst [vmem:[%s2489 + $0x70] sm:$0xff] %v2486
    %2505 = vst [vmem:[%s2489 + $0x78] sm:$0xff] %v2487
    %v2506 = vld [vmem:[%s414] sm:$0xff]
    %v2507 = vld [vmem:[%s414 + $0x8] sm:$0xff]
    %v2508 = vld [vmem:[%s414 + $0x10] sm:$0xff]
    %v2509 = vld [vmem:[%s414 + $0x18] sm:$0xff]
    %v2510 = vld [vmem:[%s414 + $0x20] sm:$0xff]
    %v2511 = vld [vmem:[%s414 + $0x28] sm:$0xff]
    %v2512 = vld [vmem:[%s414 + $0x30] sm:$0xff]
    %v2513 = vld [vmem:[%s414 + $0x38] sm:$0xff]
    %v2514 = vunpack.c.l.bf16 %v2506
    %v2515 = vunpack.c.h.bf16 %v2506
    %v2516 = vunpack.c.l.bf16 %v2507
    %v2517 = vunpack.c.h.bf16 %v2507
    %v2518 = vunpack.c.l.bf16 %v2508
    %v2519 = vunpack.c.h.bf16 %v2508
    %v2520 = vunpack.c.l.bf16 %v2509
    %v2521 = vunpack.c.h.bf16 %v2509
    %v2522 = vunpack.c.l.bf16 %v2510
    %v2523 = vunpack.c.h.bf16 %v2510
    %v2524 = vunpack.c.l.bf16 %v2511
    %v2525 = vunpack.c.h.bf16 %v2511
    %v2526 = vunpack.c.l.bf16 %v2512
    %v2527 = vunpack.c.h.bf16 %v2512
    %v2528 = vunpack.c.l.bf16 %v2513
    %v2529 = vunpack.c.h.bf16 %v2513
    %v2530 = vmul.f32 %v2514, %v594
    %v2531 = vmul.f32 %v2515, %v595
    %v2532 = vmul.f32 %v2516, %v594
    %v2533 = vmul.f32 %v2517, %v595
    %v2534 = vmul.f32 %v2518, %v594
    %v2535 = vmul.f32 %v2519, %v595
    %v2536 = vmul.f32 %v2520, %v594
    %v2537 = vmul.f32 %v2521, %v595
    %v2538 = vmul.f32 %v2522, %v594
    %v2539 = vmul.f32 %v2523, %v595
    %v2540 = vmul.f32 %v2524, %v594
    %v2541 = vmul.f32 %v2525, %v595
    %v2542 = vmul.f32 %v2526, %v594
    %v2543 = vmul.f32 %v2527, %v595
    %v2544 = vmul.f32 %v2528, %v594
    %v2545 = vmul.f32 %v2529, %v595
    %v2546 = vld [vmem:[%s986] sm:$0xff]
    %v2547 = vld [vmem:[%s986 + $0x8] sm:$0xff]
    %v2548 = vld [vmem:[%s986 + $0x10] sm:$0xff]
    %v2549 = vld [vmem:[%s986 + $0x18] sm:$0xff]
    %v2550 = vld [vmem:[%s986 + $0x20] sm:$0xff]
    %v2551 = vld [vmem:[%s986 + $0x28] sm:$0xff]
    %v2552 = vld [vmem:[%s986 + $0x30] sm:$0xff]
    %v2553 = vld [vmem:[%s986 + $0x38] sm:$0xff]
    %v2554 = vunpack.c.l.bf16 %v2546
    %v2555 = vunpack.c.h.bf16 %v2546
    %v2556 = vunpack.c.l.bf16 %v2547
    %v2557 = vunpack.c.h.bf16 %v2547
    %v2558 = vunpack.c.l.bf16 %v2548
    %v2559 = vunpack.c.h.bf16 %v2548
    %v2560 = vunpack.c.l.bf16 %v2549
    %v2561 = vunpack.c.h.bf16 %v2549
    %v2562 = vunpack.c.l.bf16 %v2550
    %v2563 = vunpack.c.h.bf16 %v2550
    %v2564 = vunpack.c.l.bf16 %v2551
    %v2565 = vunpack.c.h.bf16 %v2551
    %v2566 = vunpack.c.l.bf16 %v2552
    %v2567 = vunpack.c.h.bf16 %v2552
    %v2568 = vunpack.c.l.bf16 %v2553
    %v2569 = vunpack.c.h.bf16 %v2553
    %v2570 = vmul.f32 %v2554, %v1166
    %v2571 = vmul.f32 %v2555, %v1167
    %v2572 = vmul.f32 %v2556, %v1166
    %v2573 = vmul.f32 %v2557, %v1167
    %v2574 = vmul.f32 %v2558, %v1166
    %v2575 = vmul.f32 %v2559, %v1167
    %v2576 = vmul.f32 %v2560, %v1166
    %v2577 = vmul.f32 %v2561, %v1167
    %v2578 = vmul.f32 %v2562, %v1166
    %v2579 = vmul.f32 %v2563, %v1167
    %v2580 = vmul.f32 %v2564, %v1166
    %v2581 = vmul.f32 %v2565, %v1167
    %v2582 = vmul.f32 %v2566, %v1166
    %v2583 = vmul.f32 %v2567, %v1167
    %v2584 = vmul.f32 %v2568, %v1166
    %v2585 = vmul.f32 %v2569, %v1167
    %v2586 = vadd.f32 %v2530, %v2570
    %v2587 = vadd.f32 %v2531, %v2571
    %v2588 = vadd.f32 %v2532, %v2572
    %v2589 = vadd.f32 %v2533, %v2573
    %v2590 = vadd.f32 %v2534, %v2574
    %v2591 = vadd.f32 %v2535, %v2575
    %v2592 = vadd.f32 %v2536, %v2576
    %v2593 = vadd.f32 %v2537, %v2577
    %v2594 = vadd.f32 %v2538, %v2578
    %v2595 = vadd.f32 %v2539, %v2579
    %v2596 = vadd.f32 %v2540, %v2580
    %v2597 = vadd.f32 %v2541, %v2581
    %v2598 = vadd.f32 %v2542, %v2582
    %v2599 = vadd.f32 %v2543, %v2583
    %v2600 = vadd.f32 %v2544, %v2584
    %v2601 = vadd.f32 %v2545, %v2585
    %v2602 = vld [vmem:[%s1558] sm:$0xff]
    %v2603 = vld [vmem:[%s1558 + $0x8] sm:$0xff]
    %v2604 = vld [vmem:[%s1558 + $0x10] sm:$0xff]
    %v2605 = vld [vmem:[%s1558 + $0x18] sm:$0xff]
    %v2606 = vld [vmem:[%s1558 + $0x20] sm:$0xff]
    %v2607 = vld [vmem:[%s1558 + $0x28] sm:$0xff]
    %v2608 = vld [vmem:[%s1558 + $0x30] sm:$0xff]
    %v2609 = vld [vmem:[%s1558 + $0x38] sm:$0xff]
    %v2610 = vunpack.c.l.bf16 %v2602
    %v2611 = vunpack.c.h.bf16 %v2602
    %v2612 = vunpack.c.l.bf16 %v2603
    %v2613 = vunpack.c.h.bf16 %v2603
    %v2614 = vunpack.c.l.bf16 %v2604
    %v2615 = vunpack.c.h.bf16 %v2604
    %v2616 = vunpack.c.l.bf16 %v2605
    %v2617 = vunpack.c.h.bf16 %v2605
    %v2618 = vunpack.c.l.bf16 %v2606
    %v2619 = vunpack.c.h.bf16 %v2606
    %v2620 = vunpack.c.l.bf16 %v2607
    %v2621 = vunpack.c.h.bf16 %v2607
    %v2622 = vunpack.c.l.bf16 %v2608
    %v2623 = vunpack.c.h.bf16 %v2608
    %v2624 = vunpack.c.l.bf16 %v2609
    %v2625 = vunpack.c.h.bf16 %v2609
    %v2626 = vmul.f32 %v2610, %v1738
    %v2627 = vmul.f32 %v2611, %v1739
    %v2628 = vmul.f32 %v2612, %v1738
    %v2629 = vmul.f32 %v2613, %v1739
    %v2630 = vmul.f32 %v2614, %v1738
    %v2631 = vmul.f32 %v2615, %v1739
    %v2632 = vmul.f32 %v2616, %v1738
    %v2633 = vmul.f32 %v2617, %v1739
    %v2634 = vmul.f32 %v2618, %v1738
    %v2635 = vmul.f32 %v2619, %v1739
    %v2636 = vmul.f32 %v2620, %v1738
    %v2637 = vmul.f32 %v2621, %v1739
    %v2638 = vmul.f32 %v2622, %v1738
    %v2639 = vmul.f32 %v2623, %v1739
    %v2640 = vmul.f32 %v2624, %v1738
    %v2641 = vmul.f32 %v2625, %v1739
    %v2642 = vadd.f32 %v2586, %v2626
    %v2643 = vadd.f32 %v2587, %v2627
    %v2644 = vadd.f32 %v2588, %v2628
    %v2645 = vadd.f32 %v2589, %v2629
    %v2646 = vadd.f32 %v2590, %v2630
    %v2647 = vadd.f32 %v2591, %v2631
    %v2648 = vadd.f32 %v2592, %v2632
    %v2649 = vadd.f32 %v2593, %v2633
    %v2650 = vadd.f32 %v2594, %v2634
    %v2651 = vadd.f32 %v2595, %v2635
    %v2652 = vadd.f32 %v2596, %v2636
    %v2653 = vadd.f32 %v2597, %v2637
    %v2654 = vadd.f32 %v2598, %v2638
    %v2655 = vadd.f32 %v2599, %v2639
    %v2656 = vadd.f32 %v2600, %v2640
    %v2657 = vadd.f32 %v2601, %v2641
    %v2658 = vld [vmem:[%s2130] sm:$0xff]
    %v2659 = vld [vmem:[%s2130 + $0x8] sm:$0xff]
    %v2660 = vld [vmem:[%s2130 + $0x10] sm:$0xff]
    %v2661 = vld [vmem:[%s2130 + $0x18] sm:$0xff]
    %v2662 = vld [vmem:[%s2130 + $0x20] sm:$0xff]
    %v2663 = vld [vmem:[%s2130 + $0x28] sm:$0xff]
    %v2664 = vld [vmem:[%s2130 + $0x30] sm:$0xff]
    %v2665 = vld [vmem:[%s2130 + $0x38] sm:$0xff]
    %v2666 = vunpack.c.l.bf16 %v2658
    %v2667 = vunpack.c.h.bf16 %v2658
    %v2668 = vunpack.c.l.bf16 %v2659
    %v2669 = vunpack.c.h.bf16 %v2659
    %v2670 = vunpack.c.l.bf16 %v2660
    %v2671 = vunpack.c.h.bf16 %v2660
    %v2672 = vunpack.c.l.bf16 %v2661
    %v2673 = vunpack.c.h.bf16 %v2661
    %v2674 = vunpack.c.l.bf16 %v2662
    %v2675 = vunpack.c.h.bf16 %v2662
    %v2676 = vunpack.c.l.bf16 %v2663
    %v2677 = vunpack.c.h.bf16 %v2663
    %v2678 = vunpack.c.l.bf16 %v2664
    %v2679 = vunpack.c.h.bf16 %v2664
    %v2680 = vunpack.c.l.bf16 %v2665
    %v2681 = vunpack.c.h.bf16 %v2665
    %v2682 = vmul.f32 %v2666, %v2310
    %v2683 = vmul.f32 %v2667, %v2311
    %v2684 = vmul.f32 %v2668, %v2310
    %v2685 = vmul.f32 %v2669, %v2311
    %v2686 = vmul.f32 %v2670, %v2310
    %v2687 = vmul.f32 %v2671, %v2311
    %v2688 = vmul.f32 %v2672, %v2310
    %v2689 = vmul.f32 %v2673, %v2311
    %v2690 = vmul.f32 %v2674, %v2310
    %v2691 = vmul.f32 %v2675, %v2311
    %v2692 = vmul.f32 %v2676, %v2310
    %v2693 = vmul.f32 %v2677, %v2311
    %v2694 = vmul.f32 %v2678, %v2310
    %v2695 = vmul.f32 %v2679, %v2311
    %v2696 = vmul.f32 %v2680, %v2310
    %v2697 = vmul.f32 %v2681, %v2311
    %v2698 = vadd.f32 %v2642, %v2682
    %v2699 = vadd.f32 %v2643, %v2683
    %v2700 = vadd.f32 %v2644, %v2684
    %v2701 = vadd.f32 %v2645, %v2685
    %v2702 = vadd.f32 %v2646, %v2686
    %v2703 = vadd.f32 %v2647, %v2687
    %v2704 = vadd.f32 %v2648, %v2688
    %v2705 = vadd.f32 %v2649, %v2689
    %v2706 = vadd.f32 %v2650, %v2690
    %v2707 = vadd.f32 %v2651, %v2691
    %v2708 = vadd.f32 %v2652, %v2692
    %v2709 = vadd.f32 %v2653, %v2693
    %v2710 = vadd.f32 %v2654, %v2694
    %v2711 = vadd.f32 %v2655, %v2695
    %v2712 = vadd.f32 %v2656, %v2696
    %v2713 = vadd.f32 %v2657, %v2697
    %s2714 = smul.addr %s412, 8
    %s2715 = scalar_lea.vmem [#allocation2], %s2714
    %2716 = vst [vmem:[%s2715] sm:$0xff] %v2698
    %2717 = vst [vmem:[%s2715 + $0x8] sm:$0xff] %v2699
    %2718 = vst [vmem:[%s2715 + $0x10] sm:$0xff] %v2700
    %2719 = vst [vmem:[%s2715 + $0x18] sm:$0xff] %v2701
    %2720 = vst [vmem:[%s2715 + $0x20] sm:$0xff] %v2702
    %2721 = vst [vmem:[%s2715 + $0x28] sm:$0xff] %v2703
    %2722 = vst [vmem:[%s2715 + $0x30] sm:$0xff] %v2704
    %2723 = vst [vmem:[%s2715 + $0x38] sm:$0xff] %v2705
    %2724 = vst [vmem:[%s2715 + $0x40] sm:$0xff] %v2706
    %2725 = vst [vmem:[%s2715 + $0x48] sm:$0xff] %v2707
    %2726 = vst [vmem:[%s2715 + $0x50] sm:$0xff] %v2708
    %2727 = vst [vmem:[%s2715 + $0x58] sm:$0xff] %v2709
    %2728 = vst [vmem:[%s2715 + $0x60] sm:$0xff] %v2710
    %2729 = vst [vmem:[%s2715 + $0x68] sm:$0xff] %v2711
    %2730 = vst [vmem:[%s2715 + $0x70] sm:$0xff] %v2712
    %2731 = vst [vmem:[%s2715 + $0x78] sm:$0xff] %v2713
    // Predicated region
    $region26: #{mlfusion.1} parent=1 // pred_check
      _
    $region27: #{mlfusion.1} parent=1 // pred_check_branch
      %2733 = sbr.rel (0) target = $region29
    $region28: #{mlfusion.1} parent=1 // pred_region
      %s2735 = ssub.s32 4096, 4096
      %2736 = vsyncadd [#allocation3], %s2735
      %s2737 = sshll.u32 [#allocation2], 4
      %s2738 = int_to_ptr.vmem [resolvable:$true] %s2737
      %2743 = dma.vmem_to_hbm [thread:$0]  %s2738, 4096, %s6, [#allocation3], 256, 256, 16
    $region29: #{mlfusion.1} parent=1 // pred_fallthru
      _
    // Predicated region
    $region30: #{mlfusion.1} parent=1 // pred_check
      _
    $region31: #{mlfusion.1} parent=1 // pred_check_branch
      %2745 = sbr.rel (0) target = $region33
    $region32: #{mlfusion.1} parent=1 // pred_region
      %2746 = dma.done [#allocation3], 4096
    $region33: #{mlfusion.1} parent=1 // pred_fallthru
      _
    %2747 = vsyncpa [#allocation3], 1

</llo_original>
